<compile_context>
chip_gen: v7x
topology: tpu7x:2x2x1
jax: 0.10.0
libtpu: 0.0.40
codegen_flags: <defaults>
</compile_context>

<pallas_src>
import functools
import numpy as np
import jax
import jax.numpy as jnp
from jax import lax
from jax.experimental import pallas as pl
from jax.experimental.pallas import tpu as pltpu


LANE = 128          # TPU lane width: pad Cout to a multiple of this (lane-dense stores).
NEG_SLOPE = 0.01    # LeakyReLU negative slope.


def _round_up(x, m):
    return (x + m - 1) // m * m


def _pick_row_tile(m, target=1024, align=16):
    """Largest divisor of m that is <= target and a multiple of `align` (bf16-friendly
    sublane tiling). Falls back to the full extent, which is always a legal block."""
    hi = min(target, m)
    hi -= hi % align
    for t in range(hi, align - 1, -align):
        if t > 0 and m % t == 0:
            return t
    return m


def _compiler_params(dims, est_vmem_bytes):
    """dimension_semantics + an explicit VMEM budget when the tiles need it.
    Kept <= 48 MiB so the same config also fits v7x's 64 MiB VMEM."""
    kwargs = dict(dimension_semantics=dims)
    if est_vmem_bytes > 28 * 2**20:
        kwargs["vmem_limit_bytes"] = int(min(2 * est_vmem_bytes, 48 * 2**20))
    return pltpu.CompilerParams(**kwargs)


# ----------------------------- Pallas kernels -------------------------------

def _conv3x3_stats_kernel(x_ref, w_ref, y_ref, sum_ref, sq_ref, *, H, W, Cin, CP):
    """One image per grid step.

    x_ref : (1, H+2, W+2, Cin) bf16  — spatially padded NHWC halo tile (read once).
    w_ref : (9, Cin, CP)       bf16  — per-tap weight slices, Cout zero-padded to CP.
    y_ref : (H*W, CP)          bf16  — conv output rows for this image (lane-dense).
    sum_ref, sq_ref : (1, 8, CP) f32 — per-image partial BN statistics (reduced to 8
                                       sublane rows with VPU adds; final reduce in JAX).
    """
    # Load the halo tile once; do slicing / reshaping in f32 (robust layout), cast to
    # bf16 only at the MXU input.
    x = x_ref[0].astype(jnp.float32)                          # (H+2, W+2, Cin)

    acc = jnp.zeros((H * W, CP), jnp.float32)
    for t in range(9):                                        # static unroll: 9 taps
        dy, dx = t // 3, t % 3
        xt = x[dy:dy + H, dx:dx + W, :].reshape(H * W, Cin)   # patches built in VMEM
        acc = acc + jnp.dot(xt.astype(jnp.bfloat16), w_ref[t],
                            preferred_element_type=jnp.float32)

    y_ref[...] = acc.astype(y_ref.dtype)                      # bf16 intermediate

    # Per-image partial sums: fold (H*W, CP) -> (H*W/8, 8, CP) and reduce the major axis
    # (pure VPU adds); the remaining (N, 8, CP) -> (CP,) reduce happens in the wrapper.
    acc3 = acc.reshape(H * W // 8, 8, CP)
    sq3 = (acc * acc).reshape(H * W // 8, 8, CP)
    sum_ref[0] = jnp.sum(acc3, axis=0)
    sq_ref[0] = jnp.sum(sq3, axis=0)


def _bn_lrelu_kernel(y_ref, scale_ref, shift_ref, o_ref):
    """Elementwise BN affine apply + LeakyReLU(0.01); f32 VPU math, bf16 input."""
    y = y_ref[...].astype(jnp.float32) * scale_ref[...] + shift_ref[...]
    o_ref[...] = jnp.where(y >= 0, y, jnp.float32(NEG_SLOPE) * y)


# ------------------------------ Python wrapper -------------------------------

def conv_bn_lrelu_forward(x_nchw, conv_w, conv_b, bn_gamma, bn_beta, *,
                          eps=1e-5, apply_tile=1024):
    """Conv2d(3x3, s=1, p=1, bias) -> BatchNorm2d(train-mode) -> LeakyReLU(0.01).

    x_nchw : (N, Cin, H, W) f32;  conv_w : (Cout, Cin, 3, 3);  conv_b : (Cout,)
    bn_gamma, bn_beta : (Cout,).  Returns (N, Cout, H, W) f32.
    """
    N, Cin, H, W = x_nchw.shape
    Cout = conv_w.shape[0]
    assert conv_w.shape == (Cout, Cin, 3, 3)
    HW = H * W
    M = N * HW
    CP = _round_up(Cout, LANE)
    assert HW % 16 == 0, "H*W must be a multiple of 16"   # TODO(synk): ragged row tiles

    # ---- layout plumbing: NCHW -> padded NHWC halo tensor, bf16 (half HBM bytes) ----
    # TODO(synk): these transposes vanish if the surrounding model stays NHWC end-to-end.
    x_nhwc = jnp.transpose(x_nchw, (0, 2, 3, 1))
    x_pad = jnp.pad(x_nhwc, ((0, 0), (1, 1), (1, 1), (0, 0))).astype(jnp.bfloat16)

    # Weights: (Cout, Cin, 3, 3) -> (9, Cin, Cout) -> zero-pad lanes to CP, bf16.
    w_taps = jnp.transpose(conv_w, (2, 3, 1, 0)).reshape(9, Cin, Cout)
    w_taps = jnp.pad(w_taps, ((0, 0), (0, 0), (0, CP - Cout))).astype(jnp.bfloat16)

    # Conv bias is exactly cancelled by train-mode BatchNorm's mean subtraction, so it is
    # dropped from the kernel (perf-review item). Kept in the signature for API parity.
    del conv_b

    # ---- kernel 1: 9-tap conv matmuls + per-image BN partial statistics ----
    kern1 = functools.partial(_conv3x3_stats_kernel, H=H, W=W, Cin=Cin, CP=CP)
    est1 = (2 * ((H + 2) * (W + 2) * Cin * 2 + 9 * Cin * CP * 2
                 + HW * CP * 2 + 2 * 8 * CP * 4)
            + HW * CP * 4)  # + f32 accumulator
    y_flat, part_sum, part_sq = pl.pallas_call(
        kern1,
        out_shape=(
            jax.ShapeDtypeStruct((M, CP), jnp.bfloat16),
            jax.ShapeDtypeStruct((N, 8, CP), jnp.float32),
            jax.ShapeDtypeStruct((N, 8, CP), jnp.float32),
        ),
        grid_spec=pltpu.PrefetchScalarGridSpec(
            num_scalar_prefetch=0,
            grid=(N,),
            in_specs=[
                pl.BlockSpec((1, H + 2, W + 2, Cin), lambda n: (n, 0, 0, 0)),
                pl.BlockSpec((9, Cin, CP), lambda n: (0, 0, 0)),
            ],
            out_specs=[
                pl.BlockSpec((HW, CP), lambda n: (n, 0)),
                pl.BlockSpec((1, 8, CP), lambda n: (n, 0, 0)),
                pl.BlockSpec((1, 8, CP), lambda n: (n, 0, 0)),
            ],
        ),
        # No resident accumulator => fully "parallel" grid (megacore-shardable on v7x).
        compiler_params=_compiler_params(("parallel",), est1),
    )(x_pad, w_taps)

    # ---- fold batch statistics into a per-channel affine (tiny math, plain JAX) ----
    ch_sum = jnp.sum(part_sum, axis=(0, 1))                  # (CP,)
    ch_sq = jnp.sum(part_sq, axis=(0, 1))                    # (CP,)
    mean = ch_sum / jnp.float32(M)
    var = jnp.maximum(ch_sq / jnp.float32(M) - mean * mean, 0.0)   # clamp >= 0
    inv_std = lax.rsqrt(var + jnp.float32(eps))
    gamma_p = jnp.pad(bn_gamma.astype(jnp.float32), (0, CP - Cout))
    beta_p = jnp.pad(bn_beta.astype(jnp.float32), (0, CP - Cout))
    scale_v = gamma_p * inv_std
    shift_v = beta_p - mean * scale_v
    scale = scale_v.reshape(1, CP)
    shift = shift_v.reshape(1, CP)

    # ---- kernel 2: BN apply + LeakyReLU, large lane-dense tiles over bf16 input ----
    tm = _pick_row_tile(M, target=apply_tile)
    est2 = 2 * (tm * CP * 2 + 2 * CP * 4 + tm * CP * 4)
    out_flat = pl.pallas_call(
        _bn_lrelu_kernel,
        out_shape=jax.ShapeDtypeStruct((M, CP), jnp.float32),
        grid_spec=pltpu.PrefetchScalarGridSpec(
            num_scalar_prefetch=0,
            grid=(M // tm,),
            in_specs=[
                pl.BlockSpec((tm, CP), lambda i: (i, 0)),
                pl.BlockSpec((1, CP), lambda i: (0, 0)),
                pl.BlockSpec((1, CP), lambda i: (0, 0)),
            ],
            out_specs=pl.BlockSpec((tm, CP), lambda i: (i, 0)),
        ),
        compiler_params=_compiler_params(("parallel",), est2),
    )(y_flat, scale, shift)

    out = out_flat[:, :Cout].reshape(N, H, W, Cout)
    return jnp.transpose(out, (0, 3, 1, 2))                  # back to NCHW


# ------------------------------ reference (pure JAX) --------------------------

def cblk_reference(x_nchw, conv_w, conv_b, bn_gamma, bn_beta, eps=1e-5):
    y = lax.conv_general_dilated(
        x_nchw, conv_w, window_strides=(1, 1), padding=((1, 1), (1, 1)),
        dimension_numbers=("NCHW", "OIHW", "NCHW"))
    y = y + conv_b.reshape(1, -1, 1, 1)
    mean = jnp.mean(y, axis=(0, 2, 3), keepdims=True)
    var = jnp.mean((y - mean) ** 2, axis=(0, 2, 3), keepdims=True)
    yn = (y - mean) * lax.rsqrt(var + eps)
    yn = yn * bn_gamma.reshape(1, -1, 1, 1) + bn_beta.reshape(1, -1, 1, 1)
    return jnp.where(yn >= 0, yn, NEG_SLOPE * yn)


# ----------------------------------- main -------------------------------------

if __name__ == "__main__":
    key = jax.random.PRNGKey(0)
    kx, kw, kb = jax.random.split(key, 3)

    N, Cin, Cout, H, W, k = 2, 4, 8, 16, 16, 3

    x = jax.random.normal(kx, (N, Cin, H, W), dtype=jnp.float32)
    fan_in = Cin * k * k
    conv_w = jax.random.normal(kw, (Cout, Cin, k, k), dtype=jnp.float32) / jnp.sqrt(fan_in)
    conv_b = jax.random.normal(kb, (Cout,), dtype=jnp.float32) * 0.1
    bn_gamma = jnp.ones((Cout,), dtype=jnp.float32)
    bn_beta = jnp.zeros((Cout,), dtype=jnp.float32)

    out = conv_bn_lrelu_forward(x, conv_w, conv_b, bn_gamma, bn_beta)
    out = jax.block_until_ready(out)

    ref = cblk_reference(x, conv_w, conv_b, bn_gamma, bn_beta)
    # Tolerance reflects deliberate bf16 MXU inputs + bf16 intermediate (~4e-3 typical,
    # few-1e-2 worst-case rounding); the f32 reference is otherwise matched exactly.
    np.testing.assert_allclose(np.asarray(out), np.asarray(ref), atol=5e-2, rtol=5e-2)

    print("KERNEL_OK")
</pallas_src>

<mosaic_0001>
module attributes {stable_mosaic.version = 11 : i64} {
  func.func @_conv3x3_stats_kernel(%arg0: i32, %arg1: memref<1x18x18x4xbf16, #tpu.memory_space<vmem>>, %arg2: memref<9x4x128xbf16, #tpu.memory_space<vmem>>, %arg3: memref<256x128xbf16, #tpu.memory_space<vmem>>, %arg4: memref<1x8x128xf32, #tpu.memory_space<vmem>>, %arg5: memref<1x8x128xf32, #tpu.memory_space<vmem>>) attributes {dimension_semantics = [#tpu.dimension_semantics<parallel>], iteration_bounds = array<i64: 2>, scalar_prefetch = 0 : i64, scratch_operands = 0 : i64, tpu.core_type = #tpu.core_type<tc>, window_params = [{transform_indices = @transform_0, window_bounds = array<i64: 1, 18, 18, 4>}, {pipeline_mode = #tpu.pipeline_mode<synchronous>, transform_indices = @transform_1, window_bounds = array<i64: 9, 4, 128>}, {transform_indices = @transform_2, window_bounds = array<i64: 256, 128>}, {transform_indices = @transform_3, window_bounds = array<i64: 1, 8, 128>}, {transform_indices = @transform_4, window_bounds = array<i64: 1, 8, 128>}]} {
    %c0 = arith.constant 0 : index
    %c0_0 = arith.constant 0 : index
    %c0_1 = arith.constant 0 : index
    %c0_2 = arith.constant 0 : index
    %0 = vector.load %arg1[%c0, %c0_0, %c0_1, %c0_2] : memref<1x18x18x4xbf16, #tpu.memory_space<vmem>>, vector<1x18x18x4xbf16>
    %1 = vector.shape_cast %0 : vector<1x18x18x4xbf16> to vector<18x18x4xbf16>
    %2 = arith.extf %1 : vector<18x18x4xbf16> to vector<18x18x4xf32>
    %cst = arith.constant 0.000000e+00 : f32
    %3 = vector.broadcast %cst : f32 to vector<256x128xf32>
    %4 = vector.extract_strided_slice %2 {offsets = [0, 0, 0], sizes = [16, 16, 4], strides = [1, 1, 1]} : vector<18x18x4xf32> to vector<16x16x4xf32>
    %5 = vector.shape_cast %4 : vector<16x16x4xf32> to vector<256x4xf32>
    %6 = arith.truncf %5 : vector<256x4xf32> to vector<256x4xbf16>
    %c0_3 = arith.constant 0 : index
    %c0_4 = arith.constant 0 : index
    %c0_5 = arith.constant 0 : index
    %7 = vector.load %arg2[%c0_3, %c0_4, %c0_5] : memref<9x4x128xbf16, #tpu.memory_space<vmem>>, vector<1x4x128xbf16>
    %8 = vector.shape_cast %7 : vector<1x4x128xbf16> to vector<4x128xbf16>
    %cst_6 = arith.constant dense<0.000000e+00> : vector<256x128xf32>
    %9 = tpu.matmul %6, %8, %cst_6 {dimension_numbers = #tpu.dot_dimension_numbers<[1], [0], [0], [1], [0, 0, 1, 1], [], []>} : vector<256x4xbf16>, vector<4x128xbf16>, vector<256x128xf32> -> vector<256x128xf32>
    %10 = arith.addf %3, %9 : vector<256x128xf32>
    %11 = vector.extract_strided_slice %2 {offsets = [0, 1, 0], sizes = [16, 16, 4], strides = [1, 1, 1]} : vector<18x18x4xf32> to vector<16x16x4xf32>
    %12 = vector.shape_cast %11 : vector<16x16x4xf32> to vector<256x4xf32>
    %13 = arith.truncf %12 : vector<256x4xf32> to vector<256x4xbf16>
    %c1 = arith.constant 1 : index
    %c0_7 = arith.constant 0 : index
    %c0_8 = arith.constant 0 : index
    %14 = vector.load %arg2[%c1, %c0_7, %c0_8] : memref<9x4x128xbf16, #tpu.memory_space<vmem>>, vector<1x4x128xbf16>
    %15 = vector.shape_cast %14 : vector<1x4x128xbf16> to vector<4x128xbf16>
    %cst_9 = arith.constant dense<0.000000e+00> : vector<256x128xf32>
    %16 = tpu.matmul %13, %15, %cst_9 {dimension_numbers = #tpu.dot_dimension_numbers<[1], [0], [0], [1], [0, 0, 1, 1], [], []>} : vector<256x4xbf16>, vector<4x128xbf16>, vector<256x128xf32> -> vector<256x128xf32>
    %17 = arith.addf %10, %16 : vector<256x128xf32>
    %18 = vector.extract_strided_slice %2 {offsets = [0, 2, 0], sizes = [16, 16, 4], strides = [1, 1, 1]} : vector<18x18x4xf32> to vector<16x16x4xf32>
    %19 = vector.shape_cast %18 : vector<16x16x4xf32> to vector<256x4xf32>
    %20 = arith.truncf %19 : vector<256x4xf32> to vector<256x4xbf16>
    %c2 = arith.constant 2 : index
    %c0_10 = arith.constant 0 : index
    %c0_11 = arith.constant 0 : index
    %21 = vector.load %arg2[%c2, %c0_10, %c0_11] : memref<9x4x128xbf16, #tpu.memory_space<vmem>>, vector<1x4x128xbf16>
    %22 = vector.shape_cast %21 : vector<1x4x128xbf16> to vector<4x128xbf16>
    %cst_12 = arith.constant dense<0.000000e+00> : vector<256x128xf32>
    %23 = tpu.matmul %20, %22, %cst_12 {dimension_numbers = #tpu.dot_dimension_numbers<[1], [0], [0], [1], [0, 0, 1, 1], [], []>} : vector<256x4xbf16>, vector<4x128xbf16>, vector<256x128xf32> -> vector<256x128xf32>
    %24 = arith.addf %17, %23 : vector<256x128xf32>
    %25 = vector.extract_strided_slice %2 {offsets = [1, 0, 0], sizes = [16, 16, 4], strides = [1, 1, 1]} : vector<18x18x4xf32> to vector<16x16x4xf32>
    %26 = vector.shape_cast %25 : vector<16x16x4xf32> to vector<256x4xf32>
    %27 = arith.truncf %26 : vector<256x4xf32> to vector<256x4xbf16>
    %c3 = arith.constant 3 : index
    %c0_13 = arith.constant 0 : index
    %c0_14 = arith.constant 0 : index
    %28 = vector.load %arg2[%c3, %c0_13, %c0_14] : memref<9x4x128xbf16, #tpu.memory_space<vmem>>, vector<1x4x128xbf16>
    %29 = vector.shape_cast %28 : vector<1x4x128xbf16> to vector<4x128xbf16>
    %cst_15 = arith.constant dense<0.000000e+00> : vector<256x128xf32>
    %30 = tpu.matmul %27, %29, %cst_15 {dimension_numbers = #tpu.dot_dimension_numbers<[1], [0], [0], [1], [0, 0, 1, 1], [], []>} : vector<256x4xbf16>, vector<4x128xbf16>, vector<256x128xf32> -> vector<256x128xf32>
    %31 = arith.addf %24, %30 : vector<256x128xf32>
    %32 = vector.extract_strided_slice %2 {offsets = [1, 1, 0], sizes = [16, 16, 4], strides = [1, 1, 1]} : vector<18x18x4xf32> to vector<16x16x4xf32>
    %33 = vector.shape_cast %32 : vector<16x16x4xf32> to vector<256x4xf32>
    %34 = arith.truncf %33 : vector<256x4xf32> to vector<256x4xbf16>
    %c4 = arith.constant 4 : index
    %c0_16 = arith.constant 0 : index
    %c0_17 = arith.constant 0 : index
    %35 = vector.load %arg2[%c4, %c0_16, %c0_17] : memref<9x4x128xbf16, #tpu.memory_space<vmem>>, vector<1x4x128xbf16>
    %36 = vector.shape_cast %35 : vector<1x4x128xbf16> to vector<4x128xbf16>
    %cst_18 = arith.constant dense<0.000000e+00> : vector<256x128xf32>
    %37 = tpu.matmul %34, %36, %cst_18 {dimension_numbers = #tpu.dot_dimension_numbers<[1], [0], [0], [1], [0, 0, 1, 1], [], []>} : vector<256x4xbf16>, vector<4x128xbf16>, vector<256x128xf32> -> vector<256x128xf32>
    %38 = arith.addf %31, %37 : vector<256x128xf32>
    %39 = vector.extract_strided_slice %2 {offsets = [1, 2, 0], sizes = [16, 16, 4], strides = [1, 1, 1]} : vector<18x18x4xf32> to vector<16x16x4xf32>
    %40 = vector.shape_cast %39 : vector<16x16x4xf32> to vector<256x4xf32>
    %41 = arith.truncf %40 : vector<256x4xf32> to vector<256x4xbf16>
    %c5 = arith.constant 5 : index
    %c0_19 = arith.constant 0 : index
    %c0_20 = arith.constant 0 : index
    %42 = vector.load %arg2[%c5, %c0_19, %c0_20] : memref<9x4x128xbf16, #tpu.memory_space<vmem>>, vector<1x4x128xbf16>
    %43 = vector.shape_cast %42 : vector<1x4x128xbf16> to vector<4x128xbf16>
    %cst_21 = arith.constant dense<0.000000e+00> : vector<256x128xf32>
    %44 = tpu.matmul %41, %43, %cst_21 {dimension_numbers = #tpu.dot_dimension_numbers<[1], [0], [0], [1], [0, 0, 1, 1], [], []>} : vector<256x4xbf16>, vector<4x128xbf16>, vector<256x128xf32> -> vector<256x128xf32>
    %45 = arith.addf %38, %44 : vector<256x128xf32>
    %46 = vector.extract_strided_slice %2 {offsets = [2, 0, 0], sizes = [16, 16, 4], strides = [1, 1, 1]} : vector<18x18x4xf32> to vector<16x16x4xf32>
    %47 = vector.shape_cast %46 : vector<16x16x4xf32> to vector<256x4xf32>
    %48 = arith.truncf %47 : vector<256x4xf32> to vector<256x4xbf16>
    %c6 = arith.constant 6 : index
    %c0_22 = arith.constant 0 : index
    %c0_23 = arith.constant 0 : index
    %49 = vector.load %arg2[%c6, %c0_22, %c0_23] : memref<9x4x128xbf16, #tpu.memory_space<vmem>>, vector<1x4x128xbf16>
    %50 = vector.shape_cast %49 : vector<1x4x128xbf16> to vector<4x128xbf16>
    %cst_24 = arith.constant dense<0.000000e+00> : vector<256x128xf32>
    %51 = tpu.matmul %48, %50, %cst_24 {dimension_numbers = #tpu.dot_dimension_numbers<[1], [0], [0], [1], [0, 0, 1, 1], [], []>} : vector<256x4xbf16>, vector<4x128xbf16>, vector<256x128xf32> -> vector<256x128xf32>
    %52 = arith.addf %45, %51 : vector<256x128xf32>
    %53 = vector.extract_strided_slice %2 {offsets = [2, 1, 0], sizes = [16, 16, 4], strides = [1, 1, 1]} : vector<18x18x4xf32> to vector<16x16x4xf32>
    %54 = vector.shape_cast %53 : vector<16x16x4xf32> to vector<256x4xf32>
    %55 = arith.truncf %54 : vector<256x4xf32> to vector<256x4xbf16>
    %c7 = arith.constant 7 : index
    %c0_25 = arith.constant 0 : index
    %c0_26 = arith.constant 0 : index
    %56 = vector.load %arg2[%c7, %c0_25, %c0_26] : memref<9x4x128xbf16, #tpu.memory_space<vmem>>, vector<1x4x128xbf16>
    %57 = vector.shape_cast %56 : vector<1x4x128xbf16> to vector<4x128xbf16>
    %cst_27 = arith.constant dense<0.000000e+00> : vector<256x128xf32>
    %58 = tpu.matmul %55, %57, %cst_27 {dimension_numbers = #tpu.dot_dimension_numbers<[1], [0], [0], [1], [0, 0, 1, 1], [], []>} : vector<256x4xbf16>, vector<4x128xbf16>, vector<256x128xf32> -> vector<256x128xf32>
    %59 = arith.addf %52, %58 : vector<256x128xf32>
    %60 = vector.extract_strided_slice %2 {offsets = [2, 2, 0], sizes = [16, 16, 4], strides = [1, 1, 1]} : vector<18x18x4xf32> to vector<16x16x4xf32>
    %61 = vector.shape_cast %60 : vector<16x16x4xf32> to vector<256x4xf32>
    %62 = arith.truncf %61 : vector<256x4xf32> to vector<256x4xbf16>
    %c8 = arith.constant 8 : index
    %c0_28 = arith.constant 0 : index
    %c0_29 = arith.constant 0 : index
    %63 = vector.load %arg2[%c8, %c0_28, %c0_29] : memref<9x4x128xbf16, #tpu.memory_space<vmem>>, vector<1x4x128xbf16>
    %64 = vector.shape_cast %63 : vector<1x4x128xbf16> to vector<4x128xbf16>
    %cst_30 = arith.constant dense<0.000000e+00> : vector<256x128xf32>
    %65 = tpu.matmul %62, %64, %cst_30 {dimension_numbers = #tpu.dot_dimension_numbers<[1], [0], [0], [1], [0, 0, 1, 1], [], []>} : vector<256x4xbf16>, vector<4x128xbf16>, vector<256x128xf32> -> vector<256x128xf32>
    %66 = arith.addf %59, %65 : vector<256x128xf32>
    %67 = arith.truncf %66 : vector<256x128xf32> to vector<256x128xbf16>
    %c0_31 = arith.constant 0 : index
    %c0_32 = arith.constant 0 : index
    %68 = vector.load %arg3[%c0_31, %c0_32] : memref<256x128xbf16, #tpu.memory_space<vmem>>, vector<256x128xbf16>
    tpu.vector_store %arg3[%c0_31, %c0_32], %67 {strides = array<i32>} : memref<256x128xbf16, #tpu.memory_space<vmem>>, vector<256x128xbf16>,
    %69 = vector.shape_cast %66 : vector<256x128xf32> to vector<32x8x128xf32>
    %70 = arith.mulf %66, %66 : vector<256x128xf32>
    %71 = vector.shape_cast %70 : vector<256x128xf32> to vector<32x8x128xf32>
    %cst_33 = arith.constant dense<0.000000e+00> : vector<8x128xf32>
    %72 = vector.multi_reduction <add>, %69, %cst_33 [0] : vector<32x8x128xf32> to vector<8x128xf32>
    %c0_34 = arith.constant 0 : index
    %c0_35 = arith.constant 0 : index
    %c0_36 = arith.constant 0 : index
    %73 = vector.load %arg4[%c0_34, %c0_35, %c0_36] : memref<1x8x128xf32, #tpu.memory_space<vmem>>, vector<1x8x128xf32>
    %74 = vector.shape_cast %73 : vector<1x8x128xf32> to vector<8x128xf32>
    %75 = vector.shape_cast %72 : vector<8x128xf32> to vector<1x8x128xf32>
    tpu.vector_store %arg4[%c0_34, %c0_35, %c0_36], %75 {strides = array<i32>} : memref<1x8x128xf32, #tpu.memory_space<vmem>>, vector<1x8x128xf32>,
    %cst_37 = arith.constant dense<0.000000e+00> : vector<8x128xf32>
    %76 = vector.multi_reduction <add>, %71, %cst_37 [0] : vector<32x8x128xf32> to vector<8x128xf32>
    %c0_38 = arith.constant 0 : index
    %c0_39 = arith.constant 0 : index
    %c0_40 = arith.constant 0 : index
    %77 = vector.load %arg5[%c0_38, %c0_39, %c0_40] : memref<1x8x128xf32, #tpu.memory_space<vmem>>, vector<1x8x128xf32>
    %78 = vector.shape_cast %77 : vector<1x8x128xf32> to vector<8x128xf32>
    %79 = vector.shape_cast %76 : vector<8x128xf32> to vector<1x8x128xf32>
    tpu.vector_store %arg5[%c0_38, %c0_39, %c0_40], %79 {strides = array<i32>} : memref<1x8x128xf32, #tpu.memory_space<vmem>>, vector<1x8x128xf32>,
    return
  }
  func.func @transform_0(%arg0: i32) -> (i32, i32, i32, i32) {
    %c0_i32 = arith.constant 0 : i32
    %c0_i32_0 = arith.constant 0 : i32
    %c0_i32_1 = arith.constant 0 : i32
    %c0_i32_2 = arith.constant 0 : i32
    return %arg0, %c0_i32, %c0_i32_0, %c0_i32_1 : i32, i32, i32, i32
  }
  func.func @transform_1(%arg0: i32) -> (i32, i32, i32) {
    %c0_i32 = arith.constant 0 : i32
    %c0_i32_0 = arith.constant 0 : i32
    %c0_i32_1 = arith.constant 0 : i32
    %c0_i32_2 = arith.constant 0 : i32
    return %c0_i32, %c0_i32_0, %c0_i32_1 : i32, i32, i32
  }
  func.func @transform_2(%arg0: i32) -> (i32, i32) {
    %c0_i32 = arith.constant 0 : i32
    %c0_i32_0 = arith.constant 0 : i32
    return %arg0, %c0_i32 : i32, i32
  }
  func.func @transform_3(%arg0: i32) -> (i32, i32, i32) {
    %c0_i32 = arith.constant 0 : i32
    %c0_i32_0 = arith.constant 0 : i32
    %c0_i32_1 = arith.constant 0 : i32
    return %arg0, %c0_i32, %c0_i32_0 : i32, i32, i32
  }
  func.func @transform_4(%arg0: i32) -> (i32, i32, i32) {
    %c0_i32 = arith.constant 0 : i32
    %c0_i32_0 = arith.constant 0 : i32
    %c0_i32_1 = arith.constant 0 : i32
    return %arg0, %c0_i32, %c0_i32_0 : i32, i32, i32
  }
}

</mosaic_0001>

<llo_original>
// kernel: tpu_custom_call.1
$region0: #{tpu_custom_call.1}
  #allocation0 [shape = 'u32[]', space=smem, size = 0x4, offset = 0x4, fixed_abs, tag = 'smem constant byte address 0x4 - core index']
  #allocation1 [shape = 'u32[144,128]{1,0:T(1,128)}', space=vmem, size = 0x12000, scoped, tag = 'internal scratch']
  %s0 = inlined_call_operand.vmem [shape: bf16[2,18,18,4], index: 0, kind: input, shape index: {}]
  %s1 = inlined_call_operand.vmem [shape: bf16[9,4,128], index: 1, kind: input, shape index: {}]
  %s2 = inlined_call_operand.hbm [shape: bf16[512,128], index: 2, kind: output, shape index: {0}]
  %s3 = inlined_call_operand.hbm [shape: f32[2,8,128], index: 3, kind: output, shape index: {1}]
  %s4 = inlined_call_operand.hbm [shape: f32[2,8,128], index: 4, kind: output, shape index: {2}]
  %5 = xla_tuple %s2, %s3, %s4
  %s6 = sld [smem:[#allocation0]]
  $region57: #{tpu_custom_call.1} parent=0
    _
  %s8 = ssub.s32 1, %s6
  %s9 = scalar_select 0, %s8, %s6
  $region1: #{tpu_custom_call.1} parent=0
    #allocation2 [shape = 'u8[131072]{0}', space=vmem, size = 0x20000, scoped, tag = 'output window, operand 0']
    #allocation3 [shape = 's32[2]{0}', space=sflag, size = 0x8, scoped, tag = 'scoped memory for tpu_custom_call.1']
    #allocation4 [shape = 'u8[8192]{0}', space=vmem, size = 0x2000, scoped, tag = 'output window, operand 1']
    #allocation5 [shape = 's32[2]{0}', space=sflag, size = 0x8, scoped, tag = 'scoped memory for tpu_custom_call.1']
    #allocation6 [shape = 'u8[8192]{0}', space=vmem, size = 0x2000, scoped, tag = 'output window, operand 2']
    %10 = vsyncpa [#allocation3], 0
    %s11 = scalar_lea.sflag [#allocation3], 1
    %12 = vsyncpa %s11, 0
    %13 = vsyncpa [#allocation5], 0
    %s14 = scalar_lea.sflag [#allocation5], 1
    %15 = vsyncpa %s14, 0
    loop: start=0, step=1, limit=4
    $region2: #{tpu_custom_call.1} parent=1 // loop_pre_header
      _
    $region3: #{tpu_custom_call.1} parent=1 // loop_header
      %s17 = sphi 0, %s21
      %p18 = scmp.ge.s32.totalorder %s17, 4
      %s27 = sphi 0, %s29
      %s30 = sphi 0, %s27
      %s31 = sphi 0, %s30
      %s47 = sphi 0, %s31
      %s51 = sphi 0, %s51
      %s53 = sphi 0, %s51
      %s54 = sphi 0, %s53
      %s68 = sphi 0, %s54
      %s74 = sphi 0, %s76
      %s77 = sphi 0, %s74
      %s78 = sphi 0, %s77
      %s94 = sphi 0, %s78
      %s100 = sphi 0, %s102
      %s103 = sphi 0, %s100
      %s104 = sphi 0, %s103
      %s120 = sphi 0, %s104
      %s126 = sphi 0, %s128
      %s129 = sphi 0, %s126
      %s130 = sphi 0, %s129
      %s146 = sphi 0, %s130
    $region4: #{tpu_custom_call.1} parent=1 // loop_header_branch
      %20 = sbr.rel (%p18) target = $region8
    $region5: #{tpu_custom_call.1} parent=1 // loop_body
      %s22 = ssub.s32 %s17, 1
      %s23 = ssub.s32 %s17, 2
      %s24 = sadd.s32 %s17, 1
      %s25 = ssub.s32 %s17, %s24
      %p26 = scmp.eq.s32.totalorder %s25, 0
      %s28 = sadd.s32 %s27, 1
      %s29 = scalar_select %p26, %s27, %s28
      %p32 = pneg %p26
      %p33 = scmp.eq.s32.totalorder %s17, 1
      %p34 = por %p32, %p33
      %p35 = scmp.ne.s32.totalorder %s27, %s30
      %p36 = scmp.eq.s32.totalorder %s17, 0
      %p37 = por %p35, %p36
      %p38 = scmp.ne.s32.totalorder %s27, %s30
      %p39 = scmp.eq.s32.totalorder %s22, 1
      %p40 = por %p38, %p39
      %p41 = scmp.ne.s32.totalorder %s30, %s31
      %p42 = scmp.eq.s32.totalorder %s22, 0
      %p43 = por %p41, %p42
      %p44 = scmp.ne.s32.totalorder %s30, %s31
      %p45 = scmp.eq.s32.totalorder %s23, 1
      %p46 = por %p44, %p45
      %p48 = scmp.ne.s32.totalorder %s31, %s47
      %p49 = scmp.eq.s32.totalorder %s23, 0
      %p50 = por %p48, %p49
      %s52 = sadd.s32 %s51, 1
      %p55 = scmp.eq.s32.totalorder %s17, 1
      %p56 = scmp.ne.s32.totalorder %s51, %s53
      %p57 = scmp.eq.s32.totalorder %s17, 0
      %p58 = por %p56, %p57
      %p59 = scmp.ne.s32.totalorder %s51, %s53
      %p60 = scmp.eq.s32.totalorder %s22, 1
      %p61 = por %p59, %p60
      %p62 = scmp.ne.s32.totalorder %s53, %s54
      %p63 = scmp.eq.s32.totalorder %s22, 0
      %p64 = por %p62, %p63
      %p65 = scmp.ne.s32.totalorder %s53, %s54
      %p66 = scmp.eq.s32.totalorder %s23, 1
      %p67 = por %p65, %p66
      %p69 = scmp.ne.s32.totalorder %s54, %s68
      %p70 = scmp.eq.s32.totalorder %s23, 0
      %p71 = por %p69, %p70
      %s72 = ssub.s32 %s17, %s24
      %p73 = scmp.eq.s32.totalorder %s72, 0
      %s75 = sadd.s32 %s74, 1
      %s76 = scalar_select %p73, %s74, %s75
      %p79 = pneg %p73
      %p80 = scmp.eq.s32.totalorder %s17, 1
      %p81 = por %p79, %p80
      %p82 = scmp.ne.s32.totalorder %s74, %s77
      %p83 = scmp.eq.s32.totalorder %s17, 0
      %p84 = por %p82, %p83
      %p85 = scmp.ne.s32.totalorder %s74, %s77
      %p86 = scmp.eq.s32.totalorder %s22, 1
      %p87 = por %p85, %p86
      %p88 = scmp.ne.s32.totalorder %s77, %s78
      %p89 = scmp.eq.s32.totalorder %s22, 0
      %p90 = por %p88, %p89
      %p91 = scmp.ne.s32.totalorder %s77, %s78
      %p92 = scmp.eq.s32.totalorder %s23, 1
      %p93 = por %p91, %p92
      %p95 = scmp.ne.s32.totalorder %s78, %s94
      %p96 = scmp.eq.s32.totalorder %s23, 0
      %p97 = por %p95, %p96
      %s98 = ssub.s32 %s17, %s24
      %p99 = scmp.eq.s32.totalorder %s98, 0
      %s101 = sadd.s32 %s100, 1
      %s102 = scalar_select %p99, %s100, %s101
      %p105 = pneg %p99
      %p106 = scmp.eq.s32.totalorder %s17, 1
      %p107 = por %p105, %p106
      %p108 = scmp.ne.s32.totalorder %s100, %s103
      %p109 = scmp.eq.s32.totalorder %s17, 0
      %p110 = por %p108, %p109
      %p111 = scmp.ne.s32.totalorder %s100, %s103
      %p112 = scmp.eq.s32.totalorder %s22, 1
      %p113 = por %p111, %p112
      %p114 = scmp.ne.s32.totalorder %s103, %s104
      %p115 = scmp.eq.s32.totalorder %s22, 0
      %p116 = por %p114, %p115
      %p117 = scmp.ne.s32.totalorder %s103, %s104
      %p118 = scmp.eq.s32.totalorder %s23, 1
      %p119 = por %p117, %p118
      %p121 = scmp.ne.s32.totalorder %s104, %s120
      %p122 = scmp.eq.s32.totalorder %s23, 0
      %p123 = por %p121, %p122
      %s124 = ssub.s32 %s17, %s24
      %p125 = scmp.eq.s32.totalorder %s124, 0
      %s127 = sadd.s32 %s126, 1
      %s128 = scalar_select %p125, %s126, %s127
      %p131 = pneg %p125
      %p132 = scmp.eq.s32.totalorder %s17, 1
      %p133 = por %p131, %p132
      %p134 = scmp.ne.s32.totalorder %s126, %s129
      %p135 = scmp.eq.s32.totalorder %s17, 0
      %p136 = por %p134, %p135
      %p137 = scmp.ne.s32.totalorder %s126, %s129
      %p138 = scmp.eq.s32.totalorder %s22, 1
      %p139 = por %p137, %p138
      %p140 = scmp.ne.s32.totalorder %s129, %s130
      %p141 = scmp.eq.s32.totalorder %s22, 0
      %p142 = por %p140, %p141
      %p143 = scmp.ne.s32.totalorder %s129, %s130
      %p144 = scmp.eq.s32.totalorder %s23, 1
      %p145 = por %p143, %p144
      %p147 = scmp.ne.s32.totalorder %s130, %s146
      %p148 = scmp.eq.s32.totalorder %s23, 0
      %p149 = por %p147, %p148
      %p150 = scmp.le.s32.totalorder 1, %s17
      %p151 = scmp.lt.s32.totalorder %s17, 3
      %p152 = pnand %p150, %p151
      %p153 = pneg %p152
      // Predicated region
      $region9: #{tpu_custom_call.1} parent=5 // pred_check
        _
      $region10: #{tpu_custom_call.1} parent=5 // pred_check_branch
        %155 = sbr.rel (%p152) target = $region12
      $region11: #{tpu_custom_call.1} parent=5 // pred_region
        %s156 = ssub.s32 %s17, 1
        // Predicated region
        $region13: #{tpu_custom_call.1} parent=11 // pred_check
          %p157 = pneg %p64
        $region14: #{tpu_custom_call.1} parent=11 // pred_check_branch
          %159 = sbr.rel (%p157) target = $region16
        $region15: #{tpu_custom_call.1} parent=11 // pred_region
          _
        $region16: #{tpu_custom_call.1} parent=11 // pred_fallthru
          _
      $region12: #{tpu_custom_call.1} parent=5 // pred_fallthru
        _
      %p160 = scmp.lt.s32.totalorder %s17, 2
      // Predicated region
      $region17: #{tpu_custom_call.1} parent=5 // pred_check
        %p161 = pneg %p160
      $region18: #{tpu_custom_call.1} parent=5 // pred_check_branch
        %163 = sbr.rel (%p161) target = $region20
      $region19: #{tpu_custom_call.1} parent=5 // pred_region
        // Predicated region
        $region21: #{tpu_custom_call.1} parent=19 // pred_check
          %p164 = pneg %p37
        $region22: #{tpu_custom_call.1} parent=19 // pred_check_branch
          %166 = sbr.rel (%p164) target = $region24
        $region23: #{tpu_custom_call.1} parent=19 // pred_region
          %p167 = scmp.lt.s32.totalorder %s17, 1
          %s168 = scalar_select %p167, %s17, 1
          %s169 = smul.addr %s168, 54
          %s170 = smul.addr %s169, 4
          %s171 = scalar_lea.vmem %s0, %s170
        $region24: #{tpu_custom_call.1} parent=19 // pred_fallthru
          _
      $region20: #{tpu_custom_call.1} parent=5 // pred_fallthru
        _
      %p172 = scmp.le.s32.totalorder 1, %s17
      %p173 = scmp.lt.s32.totalorder %s17, 3
      %p174 = pnand %p172, %p173
      %p175 = pneg %p174
      // Predicated region
      $region25: #{tpu_custom_call.1} parent=5 // pred_check
        _
      $region26: #{tpu_custom_call.1} parent=5 // pred_check_branch
        %177 = sbr.rel (%p174) target = $region28
      $region27: #{tpu_custom_call.1} parent=5 // pred_region
        %s178 = ssub.s32 %s17, 1
        %p179 = scmp.lt.s32.totalorder %s22, 1
        %s180 = scalar_select %p179, %s22, 1
        %s181 = smul.addr %s180, 54
        %s182 = smul.addr %s181, 4
        %s183 = scalar_lea.vmem %s0, %s182
        %p184 = pneg %p43
        %p185 = pneg %p40
        %p186 = pneg %p64
        %p187 = pneg %p61
        %p188 = pneg %p90
        %p189 = pneg %p87
        %s190 = sand.u32 %s77, 1
        %s191 = scalar_lea.sflag [#allocation3], %s190
        %s192 = sand.u32 %s77, 1
        %s193 = smul.addr %s192, 128
        %s194 = scalar_lea.vmem [#allocation2], %s193
        %p195 = pneg %p116
        %p196 = pneg %p113
        %s197 = sand.u32 %s22, 1
        %s198 = scalar_lea.sflag [#allocation5], %s197
        %s199 = sand.u32 %s103, 1
        %s200 = smul.addr %s199, 8
        %s201 = scalar_lea.vmem [#allocation4], %s200
        %p202 = pneg %p142
        %p203 = pneg %p139
        %s204 = sand.u32 %s22, 1
        %s205 = scalar_lea.sflag [#allocation5], %s204
        %s206 = sand.u32 %s129, 1
        %s207 = smul.addr %s206, 8
        %s208 = scalar_lea.vmem [#allocation6], %s207
        %p209 = scmp.lt.s32.totalorder %s22, 1
        %s210 = scalar_select %p209, %s22, 1
        %s211 = smul.addr %s210, 54
        %s212 = smul.addr %s211, 4
        %s213 = scalar_lea.vmem %s0, %s212
        %s214 = smul.u32 32, %s22
        %v216 = vld [vmem:[%s213] sm:$0xf]
        %v217 = vld [vmem:[%s213 + $0x4] sm:$0xf]
        %v218 = vld [vmem:[%s213 + $0x8] sm:$0x1]
        %v219 = vld [vmem:[%s213 + $0xc] sm:$0xf]
        %v220 = vld [vmem:[%s213 + $0x10] sm:$0xf]
        %v221 = vld [vmem:[%s213 + $0x14] sm:$0x1]
        %v222 = vld [vmem:[%s213 + $0x18] sm:$0xf]
        %v223 = vld [vmem:[%s213 + $0x1c] sm:$0xf]
        %v224 = vld [vmem:[%s213 + $0x20] sm:$0x1]
        %v225 = vld [vmem:[%s213 + $0x24] sm:$0xf]
        %v226 = vld [vmem:[%s213 + $0x28] sm:$0xf]
        %v227 = vld [vmem:[%s213 + $0x2c] sm:$0x1]
        %v228 = vld [vmem:[%s213 + $0x30] sm:$0xf]
        %v229 = vld [vmem:[%s213 + $0x34] sm:$0xf]
        %v230 = vld [vmem:[%s213 + $0x38] sm:$0x1]
        %v231 = vld [vmem:[%s213 + $0x3c] sm:$0xf]
        %v232 = vld [vmem:[%s213 + $0x40] sm:$0xf]
        %v233 = vld [vmem:[%s213 + $0x44] sm:$0x1]
        %v234 = vld [vmem:[%s213 + $0x48] sm:$0xf]
        %v235 = vld [vmem:[%s213 + $0x4c] sm:$0xf]
        %v236 = vld [vmem:[%s213 + $0x50] sm:$0x1]
        %v237 = vld [vmem:[%s213 + $0x54] sm:$0xf]
        %v238 = vld [vmem:[%s213 + $0x58] sm:$0xf]
        %v239 = vld [vmem:[%s213 + $0x5c] sm:$0x1]
        %v240 = vld [vmem:[%s213 + $0x60] sm:$0xf]
        %v241 = vld [vmem:[%s213 + $0x64] sm:$0xf]
        %v242 = vld [vmem:[%s213 + $0x68] sm:$0x1]
        %v243 = vld [vmem:[%s213 + $0x6c] sm:$0xf]
        %v244 = vld [vmem:[%s213 + $0x70] sm:$0xf]
        %v245 = vld [vmem:[%s213 + $0x74] sm:$0x1]
        %v246 = vld [vmem:[%s213 + $0x78] sm:$0xf]
        %v247 = vld [vmem:[%s213 + $0x7c] sm:$0xf]
        %v248 = vld [vmem:[%s213 + $0x80] sm:$0x1]
        %v249 = vld [vmem:[%s213 + $0x84] sm:$0xf]
        %v250 = vld [vmem:[%s213 + $0x88] sm:$0xf]
        %v251 = vld [vmem:[%s213 + $0x8c] sm:$0x1]
        %v252 = vld [vmem:[%s213 + $0x90] sm:$0xf]
        %v253 = vld [vmem:[%s213 + $0x94] sm:$0xf]
        %v254 = vld [vmem:[%s213 + $0x98] sm:$0x1]
        %v255 = vld [vmem:[%s213 + $0x9c] sm:$0xf]
        %v256 = vld [vmem:[%s213 + $0xa0] sm:$0xf]
        %v257 = vld [vmem:[%s213 + $0xa4] sm:$0x1]
        %v258 = vld [vmem:[%s213 + $0xa8] sm:$0xf]
        %v259 = vld [vmem:[%s213 + $0xac] sm:$0xf]
        %v260 = vld [vmem:[%s213 + $0xb0] sm:$0x1]
        %v261 = vld [vmem:[%s213 + $0xb4] sm:$0xf]
        %v262 = vld [vmem:[%s213 + $0xb8] sm:$0xf]
        %v263 = vld [vmem:[%s213 + $0xbc] sm:$0x1]
        %v264 = vld [vmem:[%s213 + $0xc0] sm:$0xf]
        %v265 = vld [vmem:[%s213 + $0xc4] sm:$0xf]
        %v266 = vld [vmem:[%s213 + $0xc8] sm:$0x1]
        %v267 = vld [vmem:[%s213 + $0xcc] sm:$0xf]
        %v268 = vld [vmem:[%s213 + $0xd0] sm:$0xf]
        %v269 = vld [vmem:[%s213 + $0xd4] sm:$0x1]
        %v270 = vunpack.c.l.bf16 %v216
        %v271 = vunpack.c.l.bf16 %v217
        %v272 = vunpack.c.l.bf16 %v218
        %v273 = vunpack.c.l.bf16 %v219
        %v274 = vunpack.c.l.bf16 %v220
        %v275 = vunpack.c.l.bf16 %v221
        %v276 = vunpack.c.l.bf16 %v222
        %v277 = vunpack.c.l.bf16 %v223
        %v278 = vunpack.c.l.bf16 %v224
        %v279 = vunpack.c.l.bf16 %v225
        %v280 = vunpack.c.l.bf16 %v226
        %v281 = vunpack.c.l.bf16 %v227
        %v282 = vunpack.c.l.bf16 %v228
        %v283 = vunpack.c.l.bf16 %v229
        %v284 = vunpack.c.l.bf16 %v230
        %v285 = vunpack.c.l.bf16 %v231
        %v286 = vunpack.c.l.bf16 %v232
        %v287 = vunpack.c.l.bf16 %v233
        %v288 = vunpack.c.l.bf16 %v234
        %v289 = vunpack.c.l.bf16 %v235
        %v290 = vunpack.c.l.bf16 %v236
        %v291 = vunpack.c.l.bf16 %v237
        %v292 = vunpack.c.l.bf16 %v238
        %v293 = vunpack.c.l.bf16 %v239
        %v294 = vunpack.c.l.bf16 %v240
        %v295 = vunpack.c.l.bf16 %v241
        %v296 = vunpack.c.l.bf16 %v242
        %v297 = vunpack.c.l.bf16 %v243
        %v298 = vunpack.c.l.bf16 %v244
        %v299 = vunpack.c.l.bf16 %v245
        %v300 = vunpack.c.l.bf16 %v246
        %v301 = vunpack.c.l.bf16 %v247
        %v302 = vunpack.c.l.bf16 %v248
        %v303 = vunpack.c.l.bf16 %v249
        %v304 = vunpack.c.l.bf16 %v250
        %v305 = vunpack.c.l.bf16 %v251
        %v306 = vunpack.c.l.bf16 %v252
        %v307 = vunpack.c.l.bf16 %v253
        %v308 = vunpack.c.l.bf16 %v254
        %v309 = vunpack.c.l.bf16 %v255
        %v310 = vunpack.c.l.bf16 %v256
        %v311 = vunpack.c.l.bf16 %v257
        %v312 = vunpack.c.l.bf16 %v258
        %v313 = vunpack.c.l.bf16 %v259
        %v314 = vunpack.c.l.bf16 %v260
        %v315 = vunpack.c.l.bf16 %v261
        %v316 = vunpack.c.l.bf16 %v262
        %v317 = vunpack.c.l.bf16 %v263
        %v318 = vunpack.c.l.bf16 %v264
        %v319 = vunpack.c.l.bf16 %v265
        %v320 = vunpack.c.l.bf16 %v266
        %v321 = vunpack.c.l.bf16 %v267
        %v322 = vunpack.c.l.bf16 %v268
        %v323 = vunpack.c.l.bf16 %v269
        %v324 = vpack.c.bf16 %v271, %v270
        %v325 = vpack.c.bf16 %v274, %v273
        %v326 = vpack.c.bf16 %v277, %v276
        %v327 = vpack.c.bf16 %v280, %v279
        %v328 = vpack.c.bf16 %v283, %v282
        %v329 = vpack.c.bf16 %v286, %v285
        %v330 = vpack.c.bf16 %v289, %v288
        %v331 = vpack.c.bf16 %v292, %v291
        %v332 = vpack.c.bf16 %v295, %v294
        %v333 = vpack.c.bf16 %v298, %v297
        %v334 = vpack.c.bf16 %v301, %v300
        %v335 = vpack.c.bf16 %v304, %v303
        %v336 = vpack.c.bf16 %v307, %v306
        %v337 = vpack.c.bf16 %v310, %v309
        %v338 = vpack.c.bf16 %v313, %v312
        %v339 = vpack.c.bf16 %v316, %v315
        %v340 = vld [vmem:[%s1] sm:$0x3]
        %vm389 = vcmask 1046528
        %v390 = vrot.slane %v270, 1
        %v391 = vrot.slane %v271, 1
        %v392 = vsel %vm389, %v390, %v391
        %v393 = vrot.slane %v272, 1
        %v394 = vsel %vm389, %v391, %v393
        %v395 = vrot.slane %v273, 1
        %v396 = vrot.slane %v274, 1
        %v397 = vsel %vm389, %v395, %v396
        %v398 = vrot.slane %v275, 1
        %v399 = vsel %vm389, %v396, %v398
        %v400 = vrot.slane %v276, 1
        %v401 = vrot.slane %v277, 1
        %v402 = vsel %vm389, %v400, %v401
        %v403 = vrot.slane %v278, 1
        %v404 = vsel %vm389, %v401, %v403
        %v405 = vrot.slane %v279, 1
        %v406 = vrot.slane %v280, 1
        %v407 = vsel %vm389, %v405, %v406
        %v408 = vrot.slane %v281, 1
        %v409 = vsel %vm389, %v406, %v408
        %v410 = vrot.slane %v282, 1
        %v411 = vrot.slane %v283, 1
        %v412 = vsel %vm389, %v410, %v411
        %v413 = vrot.slane %v284, 1
        %v414 = vsel %vm389, %v411, %v413
        %v415 = vrot.slane %v285, 1
        %v416 = vrot.slane %v286, 1
        %v417 = vsel %vm389, %v415, %v416
        %v418 = vrot.slane %v287, 1
        %v419 = vsel %vm389, %v416, %v418
        %v420 = vrot.slane %v288, 1
        %v421 = vrot.slane %v289, 1
        %v422 = vsel %vm389, %v420, %v421
        %v423 = vrot.slane %v290, 1
        %v424 = vsel %vm389, %v421, %v423
        %v425 = vrot.slane %v291, 1
        %v426 = vrot.slane %v292, 1
        %v427 = vsel %vm389, %v425, %v426
        %v428 = vrot.slane %v293, 1
        %v429 = vsel %vm389, %v426, %v428
        %v430 = vrot.slane %v294, 1
        %v431 = vrot.slane %v295, 1
        %v432 = vsel %vm389, %v430, %v431
        %v433 = vrot.slane %v296, 1
        %v434 = vsel %vm389, %v431, %v433
        %v435 = vrot.slane %v297, 1
        %v436 = vrot.slane %v298, 1
        %v437 = vsel %vm389, %v435, %v436
        %v438 = vrot.slane %v299, 1
        %v439 = vsel %vm389, %v436, %v438
        %v440 = vrot.slane %v300, 1
        %v441 = vrot.slane %v301, 1
        %v442 = vsel %vm389, %v440, %v441
        %v443 = vrot.slane %v302, 1
        %v444 = vsel %vm389, %v441, %v443
        %v445 = vrot.slane %v303, 1
        %v446 = vrot.slane %v304, 1
        %v447 = vsel %vm389, %v445, %v446
        %v448 = vrot.slane %v305, 1
        %v449 = vsel %vm389, %v446, %v448
        %v450 = vrot.slane %v306, 1
        %v451 = vrot.slane %v307, 1
        %v452 = vsel %vm389, %v450, %v451
        %v453 = vrot.slane %v308, 1
        %v454 = vsel %vm389, %v451, %v453
        %v455 = vrot.slane %v309, 1
        %v456 = vrot.slane %v310, 1
        %v457 = vsel %vm389, %v455, %v456
        %v458 = vrot.slane %v311, 1
        %v459 = vsel %vm389, %v456, %v458
        %v460 = vrot.slane %v312, 1
        %v461 = vrot.slane %v313, 1
        %v462 = vsel %vm389, %v460, %v461
        %v463 = vrot.slane %v314, 1
        %v464 = vsel %vm389, %v461, %v463
        %v465 = vrot.slane %v315, 1
        %v466 = vrot.slane %v316, 1
        %v467 = vsel %vm389, %v465, %v466
        %v468 = vrot.slane %v317, 1
        %v469 = vsel %vm389, %v466, %v468
        %v502 = vpack.c.bf16 %v394, %v392
        %v503 = vpack.c.bf16 %v399, %v397
        %v504 = vpack.c.bf16 %v404, %v402
        %v505 = vpack.c.bf16 %v409, %v407
        %v506 = vpack.c.bf16 %v414, %v412
        %v507 = vpack.c.bf16 %v419, %v417
        %v508 = vpack.c.bf16 %v424, %v422
        %v509 = vpack.c.bf16 %v429, %v427
        %v510 = vpack.c.bf16 %v434, %v432
        %v511 = vpack.c.bf16 %v439, %v437
        %v512 = vpack.c.bf16 %v444, %v442
        %v513 = vpack.c.bf16 %v449, %v447
        %v514 = vpack.c.bf16 %v454, %v452
        %v515 = vpack.c.bf16 %v459, %v457
        %v516 = vpack.c.bf16 %v464, %v462
        %v517 = vpack.c.bf16 %v469, %v467
        %s518 = scalar_lea.vmem %s1, 2
        %v519 = vld [vmem:[%s518] sm:$0x3]
        %vm520 = vcmask 31744
        %v522 = vsel %vm520, %v502, 0
        %v525 = vsel %vm520, %v503, 0
        %v528 = vsel %vm520, %v504, 0
        %v531 = vsel %vm520, %v505, 0
        %v534 = vsel %vm520, %v506, 0
        %v537 = vsel %vm520, %v507, 0
        %v540 = vsel %vm520, %v508, 0
        %v543 = vsel %vm520, %v509, 0
        %v546 = vsel %vm520, %v510, 0
        %v549 = vsel %vm520, %v511, 0
        %v552 = vsel %vm520, %v512, 0
        %v555 = vsel %vm520, %v513, 0
        %v558 = vsel %vm520, %v514, 0
        %v561 = vsel %vm520, %v515, 0
        %v564 = vsel %vm520, %v516, 0
        %v567 = vsel %vm520, %v517, 0
        %vm569 = vcmask 1041408
        %v571 = vsel %vm569, %v519, 0
        %573 = vmatprep.subr.bf16.mxu0 0
        %574 = vmatpush1.bf16.msra.mxu0 %v571
        %575 = vmatprep.subr.bf16.mxu0 0
        %576 = vmatpush1.bf16.msra.mxu0 0
        %577 = vmatprep.subr.bf16.mxu0 0
        %578 = vmatpush1.bf16.msra.mxu0 0
        %579 = vmatprep.subr.bf16.mxu0 0
        %580 = vmatpush1.bf16.msra.mxu0 0
        %581 = vmatprep.subr.bf16.mxu0 0
        %582 = vmatpush1.bf16.msra.mxu0 0
        %583 = vmatprep.subr.bf16.mxu0 0
        %584 = vmatpush1.bf16.msra.mxu0 0
        %585 = vmatprep.subr.bf16.mxu0 0
        %586 = vmatpush1.bf16.msra.mxu0 0
        %587 = vmatprep.subr.bf16.mxu0 0
        %588 = vmatpush1.bf16.msra.mxu0 0
        %589 = vmatprep.subr.bf16.mxu0 0
        %590 = vmatpush1.bf16.msra.mxu0 0
        %591 = vmatprep.subr.bf16.mxu0 0
        %592 = vmatpush1.bf16.msra.mxu0 0
        %593 = vmatprep.subr.bf16.mxu0 0
        %594 = vmatpush1.bf16.msra.mxu0 0
        %595 = vmatprep.subr.bf16.mxu0 0
        %596 = vmatpush1.bf16.msra.mxu0 0
        %597 = vmatprep.subr.bf16.mxu0 0
        %598 = vmatpush1.bf16.msra.mxu0 0
        %599 = vmatprep.subr.bf16.mxu0 0
        %600 = vmatpush1.bf16.msra.mxu0 0
        %601 = vmatprep.subr.bf16.mxu0 0
        %602 = vmatpush1.bf16.msra.mxu0 0
        %603 = vmatprep.subr.bf16.mxu0 0
        %604 = vmatpush1.bf16.msra.mxu0 0
        %605 = vmatprep.mubr.bf16.mxu0 0
        %606 = vmatmul.mubr.bf16.gmra.mrb[0].mxu0 %v522
        %v607 = vpop.f32.mrb[0].mxu0
        %v608 = vadd.f32 0.0, %v607
        %v609 = vpop.f32.mrb[0].mxu0
        %v610 = vpop.f32.mrb[0].mxu0
        %v611 = vadd.f32 0.0, %v610
        %v612 = vpop.f32.mrb[0].mxu0
        %613 = vmatprep.mubr.bf16.mxu0 0
        %614 = vmatmul.mubr.bf16.gmra.mrb[0].mxu0 %v525
        %v615 = vpop.f32.mrb[0].mxu0
        %v616 = vadd.f32 0.0, %v615
        %v617 = vpop.f32.mrb[0].mxu0
        %v618 = vpop.f32.mrb[0].mxu0
        %v619 = vadd.f32 0.0, %v618
        %v620 = vpop.f32.mrb[0].mxu0
        %621 = vmatprep.mubr.bf16.mxu0 0
        %622 = vmatmul.mubr.bf16.gmra.mrb[0].mxu0 %v528
        %v623 = vpop.f32.mrb[0].mxu0
        %v624 = vadd.f32 0.0, %v623
        %v625 = vpop.f32.mrb[0].mxu0
        %v626 = vpop.f32.mrb[0].mxu0
        %v627 = vadd.f32 0.0, %v626
        %v628 = vpop.f32.mrb[0].mxu0
        %629 = vmatprep.mubr.bf16.mxu0 0
        %630 = vmatmul.mubr.bf16.gmra.mrb[0].mxu0 %v531
        %v631 = vpop.f32.mrb[0].mxu0
        %v632 = vadd.f32 0.0, %v631
        %v633 = vpop.f32.mrb[0].mxu0
        %v634 = vpop.f32.mrb[0].mxu0
        %v635 = vadd.f32 0.0, %v634
        %v636 = vpop.f32.mrb[0].mxu0
        %637 = vmatprep.mubr.bf16.mxu0 0
        %638 = vmatmul.mubr.bf16.gmra.mrb[0].mxu0 %v534
        %v639 = vpop.f32.mrb[0].mxu0
        %v640 = vadd.f32 0.0, %v639
        %v641 = vpop.f32.mrb[0].mxu0
        %v642 = vpop.f32.mrb[0].mxu0
        %v643 = vadd.f32 0.0, %v642
        %v644 = vpop.f32.mrb[0].mxu0
        %645 = vmatprep.mubr.bf16.mxu0 0
        %646 = vmatmul.mubr.bf16.gmra.mrb[0].mxu0 %v537
        %v647 = vpop.f32.mrb[0].mxu0
        %v648 = vadd.f32 0.0, %v647
        %v649 = vpop.f32.mrb[0].mxu0
        %v650 = vpop.f32.mrb[0].mxu0
        %v651 = vadd.f32 0.0, %v650
        %v652 = vpop.f32.mrb[0].mxu0
        %653 = vmatprep.mubr.bf16.mxu0 0
        %654 = vmatmul.mubr.bf16.gmra.mrb[0].mxu0 %v540
        %v655 = vpop.f32.mrb[0].mxu0
        %v656 = vadd.f32 0.0, %v655
        %v657 = vpop.f32.mrb[0].mxu0
        %v658 = vpop.f32.mrb[0].mxu0
        %v659 = vadd.f32 0.0, %v658
        %v660 = vpop.f32.mrb[0].mxu0
        %661 = vmatprep.mubr.bf16.mxu0 0
        %662 = vmatmul.mubr.bf16.gmra.mrb[0].mxu0 %v543
        %v663 = vpop.f32.mrb[0].mxu0
        %v664 = vadd.f32 0.0, %v663
        %v665 = vpop.f32.mrb[0].mxu0
        %v666 = vpop.f32.mrb[0].mxu0
        %v667 = vadd.f32 0.0, %v666
        %v668 = vpop.f32.mrb[0].mxu0
        %669 = vmatprep.mubr.bf16.mxu0 0
        %670 = vmatmul.mubr.bf16.gmra.mrb[0].mxu0 %v546
        %v671 = vpop.f32.mrb[0].mxu0
        %v672 = vadd.f32 0.0, %v671
        %v673 = vpop.f32.mrb[0].mxu0
        %v674 = vpop.f32.mrb[0].mxu0
        %v675 = vadd.f32 0.0, %v674
        %v676 = vpop.f32.mrb[0].mxu0
        %677 = vmatprep.mubr.bf16.mxu0 0
        %678 = vmatmul.mubr.bf16.gmra.mrb[0].mxu0 %v549
        %v679 = vpop.f32.mrb[0].mxu0
        %v680 = vadd.f32 0.0, %v679
        %v681 = vpop.f32.mrb[0].mxu0
        %v682 = vpop.f32.mrb[0].mxu0
        %v683 = vadd.f32 0.0, %v682
        %v684 = vpop.f32.mrb[0].mxu0
        %685 = vmatprep.mubr.bf16.mxu0 0
        %686 = vmatmul.mubr.bf16.gmra.mrb[0].mxu0 %v552
        %v687 = vpop.f32.mrb[0].mxu0
        %v688 = vadd.f32 0.0, %v687
        %v689 = vpop.f32.mrb[0].mxu0
        %v690 = vpop.f32.mrb[0].mxu0
        %v691 = vadd.f32 0.0, %v690
        %v692 = vpop.f32.mrb[0].mxu0
        %693 = vmatprep.mubr.bf16.mxu0 0
        %694 = vmatmul.mubr.bf16.gmra.mrb[0].mxu0 %v555
        %v695 = vpop.f32.mrb[0].mxu0
        %v696 = vadd.f32 0.0, %v695
        %v697 = vpop.f32.mrb[0].mxu0
        %v698 = vpop.f32.mrb[0].mxu0
        %v699 = vadd.f32 0.0, %v698
        %v700 = vpop.f32.mrb[0].mxu0
        %701 = vmatprep.mubr.bf16.mxu0 0
        %702 = vmatmul.mubr.bf16.gmra.mrb[0].mxu0 %v558
        %v703 = vpop.f32.mrb[0].mxu0
        %v704 = vadd.f32 0.0, %v703
        %v705 = vpop.f32.mrb[0].mxu0
        %v706 = vpop.f32.mrb[0].mxu0
        %v707 = vadd.f32 0.0, %v706
        %v708 = vpop.f32.mrb[0].mxu0
        %709 = vmatprep.mubr.bf16.mxu0 0
        %710 = vmatmul.mubr.bf16.gmra.mrb[0].mxu0 %v561
        %v711 = vpop.f32.mrb[0].mxu0
        %v712 = vadd.f32 0.0, %v711
        %v713 = vpop.f32.mrb[0].mxu0
        %v714 = vpop.f32.mrb[0].mxu0
        %v715 = vadd.f32 0.0, %v714
        %v716 = vpop.f32.mrb[0].mxu0
        %717 = vmatprep.mubr.bf16.mxu0 0
        %718 = vmatmul.mubr.bf16.gmra.mrb[0].mxu0 %v564
        %v719 = vpop.f32.mrb[0].mxu0
        %v720 = vadd.f32 0.0, %v719
        %v721 = vpop.f32.mrb[0].mxu0
        %v722 = vpop.f32.mrb[0].mxu0
        %v723 = vadd.f32 0.0, %v722
        %v724 = vpop.f32.mrb[0].mxu0
        %725 = vmatprep.mubr.bf16.mxu0 0
        %726 = vmatmul.mubr.bf16.gmra.mrb[0].mxu0 %v567
        %v727 = vpop.f32.mrb[0].mxu0
        %v728 = vadd.f32 0.0, %v727
        %v729 = vpop.f32.mrb[0].mxu0
        %v730 = vpop.f32.mrb[0].mxu0
        %v731 = vadd.f32 0.0, %v730
        %v732 = vpop.f32.mrb[0].mxu0
        %733 = vdwg.mxu0
        %v735 = vsel %vm520, %v324, 0
        %v738 = vsel %vm520, %v325, 0
        %v741 = vsel %vm520, %v326, 0
        %v744 = vsel %vm520, %v327, 0
        %v747 = vsel %vm520, %v328, 0
        %v750 = vsel %vm520, %v329, 0
        %v753 = vsel %vm520, %v330, 0
        %v756 = vsel %vm520, %v331, 0
        %v759 = vsel %vm520, %v332, 0
        %v762 = vsel %vm520, %v333, 0
        %v765 = vsel %vm520, %v334, 0
        %v768 = vsel %vm520, %v335, 0
        %v771 = vsel %vm520, %v336, 0
        %v774 = vsel %vm520, %v337, 0
        %v777 = vsel %vm520, %v338, 0
        %v780 = vsel %vm520, %v339, 0
        %v783 = vsel %vm569, %v340, 0
        %785 = vmatprep.subr.bf16.mxu0 0
        %786 = vmatpush1.bf16.msra.mxu0 %v783
        %787 = vmatprep.subr.bf16.mxu0 0
        %788 = vmatpush1.bf16.msra.mxu0 0
        %789 = vmatprep.subr.bf16.mxu0 0
        %790 = vmatpush1.bf16.msra.mxu0 0
        %791 = vmatprep.subr.bf16.mxu0 0
        %792 = vmatpush1.bf16.msra.mxu0 0
        %793 = vmatprep.subr.bf16.mxu0 0
        %794 = vmatpush1.bf16.msra.mxu0 0
        %795 = vmatprep.subr.bf16.mxu0 0
        %796 = vmatpush1.bf16.msra.mxu0 0
        %797 = vmatprep.subr.bf16.mxu0 0
        %798 = vmatpush1.bf16.msra.mxu0 0
        %799 = vmatprep.subr.bf16.mxu0 0
        %800 = vmatpush1.bf16.msra.mxu0 0
        %801 = vmatprep.subr.bf16.mxu0 0
        %802 = vmatpush1.bf16.msra.mxu0 0
        %803 = vmatprep.subr.bf16.mxu0 0
        %804 = vmatpush1.bf16.msra.mxu0 0
        %805 = vmatprep.subr.bf16.mxu0 0
        %806 = vmatpush1.bf16.msra.mxu0 0
        %807 = vmatprep.subr.bf16.mxu0 0
        %808 = vmatpush1.bf16.msra.mxu0 0
        %809 = vmatprep.subr.bf16.mxu0 0
        %810 = vmatpush1.bf16.msra.mxu0 0
        %811 = vmatprep.subr.bf16.mxu0 0
        %812 = vmatpush1.bf16.msra.mxu0 0
        %813 = vmatprep.subr.bf16.mxu0 0
        %814 = vmatpush1.bf16.msra.mxu0 0
        %815 = vmatprep.subr.bf16.mxu0 0
        %816 = vmatpush1.bf16.msra.mxu0 0
        %817 = vmatprep.mubr.bf16.mxu0 0
        %818 = vmatmul.mubr.bf16.gmra.mrb[0].mxu0 %v735
        %v819 = vpop.f32.mrb[0].mxu0
        %v820 = vadd.f32 %v608, %v819
        %v821 = vpop.f32.mrb[0].mxu0
        %v822 = vpop.f32.mrb[0].mxu0
        %v823 = vadd.f32 %v611, %v822
        %v824 = vpop.f32.mrb[0].mxu0
        %825 = vmatprep.mubr.bf16.mxu0 0
        %826 = vmatmul.mubr.bf16.gmra.mrb[0].mxu0 %v738
        %v827 = vpop.f32.mrb[0].mxu0
        %v828 = vadd.f32 %v616, %v827
        %v829 = vpop.f32.mrb[0].mxu0
        %v830 = vpop.f32.mrb[0].mxu0
        %v831 = vadd.f32 %v619, %v830
        %v832 = vpop.f32.mrb[0].mxu0
        %833 = vmatprep.mubr.bf16.mxu0 0
        %834 = vmatmul.mubr.bf16.gmra.mrb[0].mxu0 %v741
        %v835 = vpop.f32.mrb[0].mxu0
        %v836 = vadd.f32 %v624, %v835
        %v837 = vpop.f32.mrb[0].mxu0
        %v838 = vpop.f32.mrb[0].mxu0
        %v839 = vadd.f32 %v627, %v838
        %v840 = vpop.f32.mrb[0].mxu0
        %841 = vmatprep.mubr.bf16.mxu0 0
        %842 = vmatmul.mubr.bf16.gmra.mrb[0].mxu0 %v744
        %v843 = vpop.f32.mrb[0].mxu0
        %v844 = vadd.f32 %v632, %v843
        %v845 = vpop.f32.mrb[0].mxu0
        %v846 = vpop.f32.mrb[0].mxu0
        %v847 = vadd.f32 %v635, %v846
        %v848 = vpop.f32.mrb[0].mxu0
        %849 = vmatprep.mubr.bf16.mxu0 0
        %850 = vmatmul.mubr.bf16.gmra.mrb[0].mxu0 %v747
        %v851 = vpop.f32.mrb[0].mxu0
        %v852 = vadd.f32 %v640, %v851
        %v853 = vpop.f32.mrb[0].mxu0
        %v854 = vpop.f32.mrb[0].mxu0
        %v855 = vadd.f32 %v643, %v854
        %v856 = vpop.f32.mrb[0].mxu0
        %857 = vmatprep.mubr.bf16.mxu0 0
        %858 = vmatmul.mubr.bf16.gmra.mrb[0].mxu0 %v750
        %v859 = vpop.f32.mrb[0].mxu0
        %v860 = vadd.f32 %v648, %v859
        %v861 = vpop.f32.mrb[0].mxu0
        %v862 = vpop.f32.mrb[0].mxu0
        %v863 = vadd.f32 %v651, %v862
        %v864 = vpop.f32.mrb[0].mxu0
        %865 = vmatprep.mubr.bf16.mxu0 0
        %866 = vmatmul.mubr.bf16.gmra.mrb[0].mxu0 %v753
        %v867 = vpop.f32.mrb[0].mxu0
        %v868 = vadd.f32 %v656, %v867
        %v869 = vpop.f32.mrb[0].mxu0
        %v870 = vpop.f32.mrb[0].mxu0
        %v871 = vadd.f32 %v659, %v870
        %v872 = vpop.f32.mrb[0].mxu0
        %873 = vmatprep.mubr.bf16.mxu0 0
        %874 = vmatmul.mubr.bf16.gmra.mrb[0].mxu0 %v756
        %v875 = vpop.f32.mrb[0].mxu0
        %v876 = vadd.f32 %v664, %v875
        %v877 = vpop.f32.mrb[0].mxu0
        %v878 = vpop.f32.mrb[0].mxu0
        %v879 = vadd.f32 %v667, %v878
        %v880 = vpop.f32.mrb[0].mxu0
        %881 = vmatprep.mubr.bf16.mxu0 0
        %882 = vmatmul.mubr.bf16.gmra.mrb[0].mxu0 %v759
        %v883 = vpop.f32.mrb[0].mxu0
        %v884 = vadd.f32 %v672, %v883
        %v885 = vpop.f32.mrb[0].mxu0
        %v886 = vpop.f32.mrb[0].mxu0
        %v887 = vadd.f32 %v675, %v886
        %v888 = vpop.f32.mrb[0].mxu0
        %889 = vmatprep.mubr.bf16.mxu0 0
        %890 = vmatmul.mubr.bf16.gmra.mrb[0].mxu0 %v762
        %v891 = vpop.f32.mrb[0].mxu0
        %v892 = vadd.f32 %v680, %v891
        %v893 = vpop.f32.mrb[0].mxu0
        %v894 = vpop.f32.mrb[0].mxu0
        %v895 = vadd.f32 %v683, %v894
        %v896 = vpop.f32.mrb[0].mxu0
        %897 = vmatprep.mubr.bf16.mxu0 0
        %898 = vmatmul.mubr.bf16.gmra.mrb[0].mxu0 %v765
        %v899 = vpop.f32.mrb[0].mxu0
        %v900 = vadd.f32 %v688, %v899
        %v901 = vpop.f32.mrb[0].mxu0
        %v902 = vpop.f32.mrb[0].mxu0
        %v903 = vadd.f32 %v691, %v902
        %v904 = vpop.f32.mrb[0].mxu0
        %905 = vmatprep.mubr.bf16.mxu0 0
        %906 = vmatmul.mubr.bf16.gmra.mrb[0].mxu0 %v768
        %v907 = vpop.f32.mrb[0].mxu0
        %v908 = vadd.f32 %v696, %v907
        %v909 = vpop.f32.mrb[0].mxu0
        %v910 = vpop.f32.mrb[0].mxu0
        %v911 = vadd.f32 %v699, %v910
        %v912 = vpop.f32.mrb[0].mxu0
        %913 = vmatprep.mubr.bf16.mxu0 0
        %914 = vmatmul.mubr.bf16.gmra.mrb[0].mxu0 %v771
        %v915 = vpop.f32.mrb[0].mxu0
        %v916 = vadd.f32 %v704, %v915
        %v917 = vpop.f32.mrb[0].mxu0
        %v918 = vpop.f32.mrb[0].mxu0
        %v919 = vadd.f32 %v707, %v918
        %v920 = vpop.f32.mrb[0].mxu0
        %921 = vmatprep.mubr.bf16.mxu0 0
        %922 = vmatmul.mubr.bf16.gmra.mrb[0].mxu0 %v774
        %v923 = vpop.f32.mrb[0].mxu0
        %v924 = vadd.f32 %v712, %v923
        %v925 = vpop.f32.mrb[0].mxu0
        %v926 = vpop.f32.mrb[0].mxu0
        %v927 = vadd.f32 %v715, %v926
        %v928 = vpop.f32.mrb[0].mxu0
        %929 = vmatprep.mubr.bf16.mxu0 0
        %930 = vmatmul.mubr.bf16.gmra.mrb[0].mxu0 %v777
        %v931 = vpop.f32.mrb[0].mxu0
        %v932 = vadd.f32 %v720, %v931
        %v933 = vpop.f32.mrb[0].mxu0
        %v934 = vpop.f32.mrb[0].mxu0
        %v935 = vadd.f32 %v723, %v934
        %v936 = vpop.f32.mrb[0].mxu0
        %937 = vmatprep.mubr.bf16.mxu0 0
        %938 = vmatmul.mubr.bf16.gmra.mrb[0].mxu0 %v780
        %v939 = vpop.f32.mrb[0].mxu0
        %v940 = vadd.f32 %v728, %v939
        %v941 = vpop.f32.mrb[0].mxu0
        %v942 = vpop.f32.mrb[0].mxu0
        %v943 = vadd.f32 %v731, %v942
        %v944 = vpop.f32.mrb[0].mxu0
        %945 = vdwg.mxu0
        %vm946 = vcmask 1045504
        %v947 = vrot.slane %v270, 2
        %v948 = vrot.slane %v271, 2
        %v949 = vsel %vm946, %v947, %v948
        %v950 = vrot.slane %v272, 2
        %v951 = vsel %vm946, %v948, %v950
        %v952 = vrot.slane %v273, 2
        %v953 = vrot.slane %v274, 2
        %v954 = vsel %vm946, %v952, %v953
        %v955 = vrot.slane %v275, 2
        %v956 = vsel %vm946, %v953, %v955
        %v957 = vrot.slane %v276, 2
        %v958 = vrot.slane %v277, 2
        %v959 = vsel %vm946, %v957, %v958
        %v960 = vrot.slane %v278, 2
        %v961 = vsel %vm946, %v958, %v960
        %v962 = vrot.slane %v279, 2
        %v963 = vrot.slane %v280, 2
        %v964 = vsel %vm946, %v962, %v963
        %v965 = vrot.slane %v281, 2
        %v966 = vsel %vm946, %v963, %v965
        %v967 = vrot.slane %v282, 2
        %v968 = vrot.slane %v283, 2
        %v969 = vsel %vm946, %v967, %v968
        %v970 = vrot.slane %v284, 2
        %v971 = vsel %vm946, %v968, %v970
        %v972 = vrot.slane %v285, 2
        %v973 = vrot.slane %v286, 2
        %v974 = vsel %vm946, %v972, %v973
        %v975 = vrot.slane %v287, 2
        %v976 = vsel %vm946, %v973, %v975
        %v977 = vrot.slane %v288, 2
        %v978 = vrot.slane %v289, 2
        %v979 = vsel %vm946, %v977, %v978
        %v980 = vrot.slane %v290, 2
        %v981 = vsel %vm946, %v978, %v980
        %v982 = vrot.slane %v291, 2
        %v983 = vrot.slane %v292, 2
        %v984 = vsel %vm946, %v982, %v983
        %v985 = vrot.slane %v293, 2
        %v986 = vsel %vm946, %v983, %v985
        %v987 = vrot.slane %v294, 2
        %v988 = vrot.slane %v295, 2
        %v989 = vsel %vm946, %v987, %v988
        %v990 = vrot.slane %v296, 2
        %v991 = vsel %vm946, %v988, %v990
        %v992 = vrot.slane %v297, 2
        %v993 = vrot.slane %v298, 2
        %v994 = vsel %vm946, %v992, %v993
        %v995 = vrot.slane %v299, 2
        %v996 = vsel %vm946, %v993, %v995
        %v997 = vrot.slane %v300, 2
        %v998 = vrot.slane %v301, 2
        %v999 = vsel %vm946, %v997, %v998
        %v1000 = vrot.slane %v302, 2
        %v1001 = vsel %vm946, %v998, %v1000
        %v1002 = vrot.slane %v303, 2
        %v1003 = vrot.slane %v304, 2
        %v1004 = vsel %vm946, %v1002, %v1003
        %v1005 = vrot.slane %v305, 2
        %v1006 = vsel %vm946, %v1003, %v1005
        %v1007 = vrot.slane %v306, 2
        %v1008 = vrot.slane %v307, 2
        %v1009 = vsel %vm946, %v1007, %v1008
        %v1010 = vrot.slane %v308, 2
        %v1011 = vsel %vm946, %v1008, %v1010
        %v1012 = vrot.slane %v309, 2
        %v1013 = vrot.slane %v310, 2
        %v1014 = vsel %vm946, %v1012, %v1013
        %v1015 = vrot.slane %v311, 2
        %v1016 = vsel %vm946, %v1013, %v1015
        %v1017 = vrot.slane %v312, 2
        %v1018 = vrot.slane %v313, 2
        %v1019 = vsel %vm946, %v1017, %v1018
        %v1020 = vrot.slane %v314, 2
        %v1021 = vsel %vm946, %v1018, %v1020
        %v1022 = vrot.slane %v315, 2
        %v1023 = vrot.slane %v316, 2
        %v1024 = vsel %vm946, %v1022, %v1023
        %v1025 = vrot.slane %v317, 2
        %v1026 = vsel %vm946, %v1023, %v1025
        %v1059 = vpack.c.bf16 %v951, %v949
        %v1060 = vpack.c.bf16 %v956, %v954
        %v1061 = vpack.c.bf16 %v961, %v959
        %v1062 = vpack.c.bf16 %v966, %v964
        %v1063 = vpack.c.bf16 %v971, %v969
        %v1064 = vpack.c.bf16 %v976, %v974
        %v1065 = vpack.c.bf16 %v981, %v979
        %v1066 = vpack.c.bf16 %v986, %v984
        %v1067 = vpack.c.bf16 %v991, %v989
        %v1068 = vpack.c.bf16 %v996, %v994
        %v1069 = vpack.c.bf16 %v1001, %v999
        %v1070 = vpack.c.bf16 %v1006, %v1004
        %v1071 = vpack.c.bf16 %v1011, %v1009
        %v1072 = vpack.c.bf16 %v1016, %v1014
        %v1073 = vpack.c.bf16 %v1021, %v1019
        %v1074 = vpack.c.bf16 %v1026, %v1024
        %s1075 = scalar_lea.vmem %s1, 4
        %v1076 = vld [vmem:[%s1075] sm:$0x3]
        %v1078 = vsel %vm520, %v1059, 0
        %v1081 = vsel %vm520, %v1060, 0
        %v1084 = vsel %vm520, %v1061, 0
        %v1087 = vsel %vm520, %v1062, 0
        %v1090 = vsel %vm520, %v1063, 0
        %v1093 = vsel %vm520, %v1064, 0
        %v1096 = vsel %vm520, %v1065, 0
        %v1099 = vsel %vm520, %v1066, 0
        %v1102 = vsel %vm520, %v1067, 0
        %v1105 = vsel %vm520, %v1068, 0
        %v1108 = vsel %vm520, %v1069, 0
        %v1111 = vsel %vm520, %v1070, 0
        %v1114 = vsel %vm520, %v1071, 0
        %v1117 = vsel %vm520, %v1072, 0
        %v1120 = vsel %vm520, %v1073, 0
        %v1123 = vsel %vm520, %v1074, 0
        %v1126 = vsel %vm569, %v1076, 0
        %1128 = vmatprep.subr.bf16.mxu0 0
        %1129 = vmatpush1.bf16.msra.mxu0 %v1126
        %1130 = vmatprep.subr.bf16.mxu0 0
        %1131 = vmatpush1.bf16.msra.mxu0 0
        %1132 = vmatprep.subr.bf16.mxu0 0
        %1133 = vmatpush1.bf16.msra.mxu0 0
        %1134 = vmatprep.subr.bf16.mxu0 0
        %1135 = vmatpush1.bf16.msra.mxu0 0
        %1136 = vmatprep.subr.bf16.mxu0 0
        %1137 = vmatpush1.bf16.msra.mxu0 0
        %1138 = vmatprep.subr.bf16.mxu0 0
        %1139 = vmatpush1.bf16.msra.mxu0 0
        %1140 = vmatprep.subr.bf16.mxu0 0
        %1141 = vmatpush1.bf16.msra.mxu0 0
        %1142 = vmatprep.subr.bf16.mxu0 0
        %1143 = vmatpush1.bf16.msra.mxu0 0
        %1144 = vmatprep.subr.bf16.mxu0 0
        %1145 = vmatpush1.bf16.msra.mxu0 0
        %1146 = vmatprep.subr.bf16.mxu0 0
        %1147 = vmatpush1.bf16.msra.mxu0 0
        %1148 = vmatprep.subr.bf16.mxu0 0
        %1149 = vmatpush1.bf16.msra.mxu0 0
        %1150 = vmatprep.subr.bf16.mxu0 0
        %1151 = vmatpush1.bf16.msra.mxu0 0
        %1152 = vmatprep.subr.bf16.mxu0 0
        %1153 = vmatpush1.bf16.msra.mxu0 0
        %1154 = vmatprep.subr.bf16.mxu0 0
        %1155 = vmatpush1.bf16.msra.mxu0 0
        %1156 = vmatprep.subr.bf16.mxu0 0
        %1157 = vmatpush1.bf16.msra.mxu0 0
        %1158 = vmatprep.subr.bf16.mxu0 0
        %1159 = vmatpush1.bf16.msra.mxu0 0
        %1160 = vmatprep.mubr.bf16.mxu0 0
        %1161 = vmatmul.mubr.bf16.gmra.mrb[0].mxu0 %v1078
        %v1162 = vpop.f32.mrb[0].mxu0
        %v1163 = vadd.f32 0.0, %v1162
        %v1164 = vpop.f32.mrb[0].mxu0
        %v1165 = vpop.f32.mrb[0].mxu0
        %v1166 = vadd.f32 0.0, %v1165
        %v1167 = vpop.f32.mrb[0].mxu0
        %1168 = vmatprep.mubr.bf16.mxu0 0
        %1169 = vmatmul.mubr.bf16.gmra.mrb[0].mxu0 %v1081
        %v1170 = vpop.f32.mrb[0].mxu0
        %v1171 = vadd.f32 0.0, %v1170
        %v1172 = vpop.f32.mrb[0].mxu0
        %v1173 = vpop.f32.mrb[0].mxu0
        %v1174 = vadd.f32 0.0, %v1173
        %v1175 = vpop.f32.mrb[0].mxu0
        %1176 = vmatprep.mubr.bf16.mxu0 0
        %1177 = vmatmul.mubr.bf16.gmra.mrb[0].mxu0 %v1084
        %v1178 = vpop.f32.mrb[0].mxu0
        %v1179 = vadd.f32 0.0, %v1178
        %v1180 = vpop.f32.mrb[0].mxu0
        %v1181 = vpop.f32.mrb[0].mxu0
        %v1182 = vadd.f32 0.0, %v1181
        %v1183 = vpop.f32.mrb[0].mxu0
        %1184 = vmatprep.mubr.bf16.mxu0 0
        %1185 = vmatmul.mubr.bf16.gmra.mrb[0].mxu0 %v1087
        %v1186 = vpop.f32.mrb[0].mxu0
        %v1187 = vadd.f32 0.0, %v1186
        %v1188 = vpop.f32.mrb[0].mxu0
        %v1189 = vpop.f32.mrb[0].mxu0
        %v1190 = vadd.f32 0.0, %v1189
        %v1191 = vpop.f32.mrb[0].mxu0
        %1192 = vmatprep.mubr.bf16.mxu0 0
        %1193 = vmatmul.mubr.bf16.gmra.mrb[0].mxu0 %v1090
        %v1194 = vpop.f32.mrb[0].mxu0
        %v1195 = vadd.f32 0.0, %v1194
        %v1196 = vpop.f32.mrb[0].mxu0
        %v1197 = vpop.f32.mrb[0].mxu0
        %v1198 = vadd.f32 0.0, %v1197
        %v1199 = vpop.f32.mrb[0].mxu0
        %1200 = vmatprep.mubr.bf16.mxu0 0
        %1201 = vmatmul.mubr.bf16.gmra.mrb[0].mxu0 %v1093
        %v1202 = vpop.f32.mrb[0].mxu0
        %v1203 = vadd.f32 0.0, %v1202
        %v1204 = vpop.f32.mrb[0].mxu0
        %v1205 = vpop.f32.mrb[0].mxu0
        %v1206 = vadd.f32 0.0, %v1205
        %v1207 = vpop.f32.mrb[0].mxu0
        %1208 = vmatprep.mubr.bf16.mxu0 0
        %1209 = vmatmul.mubr.bf16.gmra.mrb[0].mxu0 %v1096
        %v1210 = vpop.f32.mrb[0].mxu0
        %v1211 = vadd.f32 0.0, %v1210
        %v1212 = vpop.f32.mrb[0].mxu0
        %v1213 = vpop.f32.mrb[0].mxu0
        %v1214 = vadd.f32 0.0, %v1213
        %v1215 = vpop.f32.mrb[0].mxu0
        %1216 = vmatprep.mubr.bf16.mxu0 0
        %1217 = vmatmul.mubr.bf16.gmra.mrb[0].mxu0 %v1099
        %v1218 = vpop.f32.mrb[0].mxu0
        %v1219 = vadd.f32 0.0, %v1218
        %v1220 = vpop.f32.mrb[0].mxu0
        %v1221 = vpop.f32.mrb[0].mxu0
        %v1222 = vadd.f32 0.0, %v1221
        %v1223 = vpop.f32.mrb[0].mxu0
        %1224 = vmatprep.mubr.bf16.mxu0 0
        %1225 = vmatmul.mubr.bf16.gmra.mrb[0].mxu0 %v1102
        %v1226 = vpop.f32.mrb[0].mxu0
        %v1227 = vadd.f32 0.0, %v1226
        %v1228 = vpop.f32.mrb[0].mxu0
        %v1229 = vpop.f32.mrb[0].mxu0
        %v1230 = vadd.f32 0.0, %v1229
        %v1231 = vpop.f32.mrb[0].mxu0
        %1232 = vmatprep.mubr.bf16.mxu0 0
        %1233 = vmatmul.mubr.bf16.gmra.mrb[0].mxu0 %v1105
        %v1234 = vpop.f32.mrb[0].mxu0
        %v1235 = vadd.f32 0.0, %v1234
        %v1236 = vpop.f32.mrb[0].mxu0
        %v1237 = vpop.f32.mrb[0].mxu0
        %v1238 = vadd.f32 0.0, %v1237
        %v1239 = vpop.f32.mrb[0].mxu0
        %1240 = vmatprep.mubr.bf16.mxu0 0
        %1241 = vmatmul.mubr.bf16.gmra.mrb[0].mxu0 %v1108
        %v1242 = vpop.f32.mrb[0].mxu0
        %v1243 = vadd.f32 0.0, %v1242
        %v1244 = vpop.f32.mrb[0].mxu0
        %v1245 = vpop.f32.mrb[0].mxu0
        %v1246 = vadd.f32 0.0, %v1245
        %v1247 = vpop.f32.mrb[0].mxu0
        %1248 = vmatprep.mubr.bf16.mxu0 0
        %1249 = vmatmul.mubr.bf16.gmra.mrb[0].mxu0 %v1111
        %v1250 = vpop.f32.mrb[0].mxu0
        %v1251 = vadd.f32 0.0, %v1250
        %v1252 = vpop.f32.mrb[0].mxu0
        %v1253 = vpop.f32.mrb[0].mxu0
        %v1254 = vadd.f32 0.0, %v1253
        %v1255 = vpop.f32.mrb[0].mxu0
        %1256 = vmatprep.mubr.bf16.mxu0 0
        %1257 = vmatmul.mubr.bf16.gmra.mrb[0].mxu0 %v1114
        %v1258 = vpop.f32.mrb[0].mxu0
        %v1259 = vadd.f32 0.0, %v1258
        %v1260 = vpop.f32.mrb[0].mxu0
        %v1261 = vpop.f32.mrb[0].mxu0
        %v1262 = vadd.f32 0.0, %v1261
        %v1263 = vpop.f32.mrb[0].mxu0
        %1264 = vmatprep.mubr.bf16.mxu0 0
        %1265 = vmatmul.mubr.bf16.gmra.mrb[0].mxu0 %v1117
        %v1266 = vpop.f32.mrb[0].mxu0
        %v1267 = vadd.f32 0.0, %v1266
        %v1268 = vpop.f32.mrb[0].mxu0
        %v1269 = vpop.f32.mrb[0].mxu0
        %v1270 = vadd.f32 0.0, %v1269
        %v1271 = vpop.f32.mrb[0].mxu0
        %1272 = vmatprep.mubr.bf16.mxu0 0
        %1273 = vmatmul.mubr.bf16.gmra.mrb[0].mxu0 %v1120
        %v1274 = vpop.f32.mrb[0].mxu0
        %v1275 = vadd.f32 0.0, %v1274
        %v1276 = vpop.f32.mrb[0].mxu0
        %v1277 = vpop.f32.mrb[0].mxu0
        %v1278 = vadd.f32 0.0, %v1277
        %v1279 = vpop.f32.mrb[0].mxu0
        %1280 = vmatprep.mubr.bf16.mxu0 0
        %1281 = vmatmul.mubr.bf16.gmra.mrb[0].mxu0 %v1123
        %v1282 = vpop.f32.mrb[0].mxu0
        %v1283 = vadd.f32 0.0, %v1282
        %v1284 = vpop.f32.mrb[0].mxu0
        %v1285 = vpop.f32.mrb[0].mxu0
        %v1286 = vadd.f32 0.0, %v1285
        %v1287 = vpop.f32.mrb[0].mxu0
        %1288 = vdwg.mxu0
        %v1289 = vadd.f32 %v820, %v1163
        %v1290 = vadd.f32 %v823, %v1166
        %v1291 = vadd.f32 %v828, %v1171
        %v1292 = vadd.f32 %v831, %v1174
        %v1293 = vadd.f32 %v836, %v1179
        %v1294 = vadd.f32 %v839, %v1182
        %v1295 = vadd.f32 %v844, %v1187
        %v1296 = vadd.f32 %v847, %v1190
        %v1297 = vadd.f32 %v852, %v1195
        %v1298 = vadd.f32 %v855, %v1198
        %v1299 = vadd.f32 %v860, %v1203
        %v1300 = vadd.f32 %v863, %v1206
        %v1301 = vadd.f32 %v868, %v1211
        %v1302 = vadd.f32 %v871, %v1214
        %v1303 = vadd.f32 %v876, %v1219
        %v1304 = vadd.f32 %v879, %v1222
        %v1305 = vadd.f32 %v884, %v1227
        %v1306 = vadd.f32 %v887, %v1230
        %v1307 = vadd.f32 %v892, %v1235
        %v1308 = vadd.f32 %v895, %v1238
        %v1309 = vadd.f32 %v900, %v1243
        %v1310 = vadd.f32 %v903, %v1246
        %v1311 = vadd.f32 %v908, %v1251
        %v1312 = vadd.f32 %v911, %v1254
        %v1313 = vadd.f32 %v916, %v1259
        %v1314 = vadd.f32 %v919, %v1262
        %v1315 = vadd.f32 %v924, %v1267
        %v1316 = vadd.f32 %v927, %v1270
        %v1317 = vadd.f32 %v932, %v1275
        %v1318 = vadd.f32 %v935, %v1278
        %v1319 = vadd.f32 %v940, %v1283
        %v1320 = vadd.f32 %v943, %v1286
        %v1321 = vpack.c.bf16 %v319, %v318
        %s1322 = scalar_lea.vmem %s1, 6
        %v1323 = vld [vmem:[%s1322] sm:$0x3]
        %v1325 = vsel %vm520, %v1321, 0
        %v1328 = vsel %vm569, %v1323, 0
        %1330 = vmatprep.subr.bf16.mxu0 0
        %1331 = vmatpush1.bf16.msra.mxu0 %v1328
        %1332 = vmatprep.subr.bf16.mxu0 0
        %1333 = vmatpush1.bf16.msra.mxu0 0
        %1334 = vmatprep.subr.bf16.mxu0 0
        %1335 = vmatpush1.bf16.msra.mxu0 0
        %1336 = vmatprep.subr.bf16.mxu0 0
        %1337 = vmatpush1.bf16.msra.mxu0 0
        %1338 = vmatprep.subr.bf16.mxu0 0
        %1339 = vmatpush1.bf16.msra.mxu0 0
        %1340 = vmatprep.subr.bf16.mxu0 0
        %1341 = vmatpush1.bf16.msra.mxu0 0
        %1342 = vmatprep.subr.bf16.mxu0 0
        %1343 = vmatpush1.bf16.msra.mxu0 0
        %1344 = vmatprep.subr.bf16.mxu0 0
        %1345 = vmatpush1.bf16.msra.mxu0 0
        %1346 = vmatprep.subr.bf16.mxu0 0
        %1347 = vmatpush1.bf16.msra.mxu0 0
        %1348 = vmatprep.subr.bf16.mxu0 0
        %1349 = vmatpush1.bf16.msra.mxu0 0
        %1350 = vmatprep.subr.bf16.mxu0 0
        %1351 = vmatpush1.bf16.msra.mxu0 0
        %1352 = vmatprep.subr.bf16.mxu0 0
        %1353 = vmatpush1.bf16.msra.mxu0 0
        %1354 = vmatprep.subr.bf16.mxu0 0
        %1355 = vmatpush1.bf16.msra.mxu0 0
        %1356 = vmatprep.subr.bf16.mxu0 0
        %1357 = vmatpush1.bf16.msra.mxu0 0
        %1358 = vmatprep.subr.bf16.mxu0 0
        %1359 = vmatpush1.bf16.msra.mxu0 0
        %1360 = vmatprep.subr.bf16.mxu0 0
        %1361 = vmatpush1.bf16.msra.mxu0 0
        %1362 = vmatprep.mubr.bf16.mxu0 0
        %1363 = vmatmul.mubr.bf16.gmra.mrb[0].mxu0 %v738
        %v1364 = vpop.f32.mrb[0].mxu0
        %v1365 = vadd.f32 0.0, %v1364
        %v1366 = vpop.f32.mrb[0].mxu0
        %v1367 = vpop.f32.mrb[0].mxu0
        %v1368 = vadd.f32 0.0, %v1367
        %v1369 = vpop.f32.mrb[0].mxu0
        %1370 = vmatprep.mubr.bf16.mxu0 0
        %1371 = vmatmul.mubr.bf16.gmra.mrb[0].mxu0 %v741
        %v1372 = vpop.f32.mrb[0].mxu0
        %v1373 = vadd.f32 0.0, %v1372
        %v1374 = vpop.f32.mrb[0].mxu0
        %v1375 = vpop.f32.mrb[0].mxu0
        %v1376 = vadd.f32 0.0, %v1375
        %v1377 = vpop.f32.mrb[0].mxu0
        %1378 = vmatprep.mubr.bf16.mxu0 0
        %1379 = vmatmul.mubr.bf16.gmra.mrb[0].mxu0 %v744
        %v1380 = vpop.f32.mrb[0].mxu0
        %v1381 = vadd.f32 0.0, %v1380
        %v1382 = vpop.f32.mrb[0].mxu0
        %v1383 = vpop.f32.mrb[0].mxu0
        %v1384 = vadd.f32 0.0, %v1383
        %v1385 = vpop.f32.mrb[0].mxu0
        %1386 = vmatprep.mubr.bf16.mxu0 0
        %1387 = vmatmul.mubr.bf16.gmra.mrb[0].mxu0 %v747
        %v1388 = vpop.f32.mrb[0].mxu0
        %v1389 = vadd.f32 0.0, %v1388
        %v1390 = vpop.f32.mrb[0].mxu0
        %v1391 = vpop.f32.mrb[0].mxu0
        %v1392 = vadd.f32 0.0, %v1391
        %v1393 = vpop.f32.mrb[0].mxu0
        %1394 = vmatprep.mubr.bf16.mxu0 0
        %1395 = vmatmul.mubr.bf16.gmra.mrb[0].mxu0 %v750
        %v1396 = vpop.f32.mrb[0].mxu0
        %v1397 = vadd.f32 0.0, %v1396
        %v1398 = vpop.f32.mrb[0].mxu0
        %v1399 = vpop.f32.mrb[0].mxu0
        %v1400 = vadd.f32 0.0, %v1399
        %v1401 = vpop.f32.mrb[0].mxu0
        %1402 = vmatprep.mubr.bf16.mxu0 0
        %1403 = vmatmul.mubr.bf16.gmra.mrb[0].mxu0 %v753
        %v1404 = vpop.f32.mrb[0].mxu0
        %v1405 = vadd.f32 0.0, %v1404
        %v1406 = vpop.f32.mrb[0].mxu0
        %v1407 = vpop.f32.mrb[0].mxu0
        %v1408 = vadd.f32 0.0, %v1407
        %v1409 = vpop.f32.mrb[0].mxu0
        %1410 = vmatprep.mubr.bf16.mxu0 0
        %1411 = vmatmul.mubr.bf16.gmra.mrb[0].mxu0 %v756
        %v1412 = vpop.f32.mrb[0].mxu0
        %v1413 = vadd.f32 0.0, %v1412
        %v1414 = vpop.f32.mrb[0].mxu0
        %v1415 = vpop.f32.mrb[0].mxu0
        %v1416 = vadd.f32 0.0, %v1415
        %v1417 = vpop.f32.mrb[0].mxu0
        %1418 = vmatprep.mubr.bf16.mxu0 0
        %1419 = vmatmul.mubr.bf16.gmra.mrb[0].mxu0 %v759
        %v1420 = vpop.f32.mrb[0].mxu0
        %v1421 = vadd.f32 0.0, %v1420
        %v1422 = vpop.f32.mrb[0].mxu0
        %v1423 = vpop.f32.mrb[0].mxu0
        %v1424 = vadd.f32 0.0, %v1423
        %v1425 = vpop.f32.mrb[0].mxu0
        %1426 = vmatprep.mubr.bf16.mxu0 0
        %1427 = vmatmul.mubr.bf16.gmra.mrb[0].mxu0 %v762
        %v1428 = vpop.f32.mrb[0].mxu0
        %v1429 = vadd.f32 0.0, %v1428
        %v1430 = vpop.f32.mrb[0].mxu0
        %v1431 = vpop.f32.mrb[0].mxu0
        %v1432 = vadd.f32 0.0, %v1431
        %v1433 = vpop.f32.mrb[0].mxu0
        %1434 = vmatprep.mubr.bf16.mxu0 0
        %1435 = vmatmul.mubr.bf16.gmra.mrb[0].mxu0 %v765
        %v1436 = vpop.f32.mrb[0].mxu0
        %v1437 = vadd.f32 0.0, %v1436
        %v1438 = vpop.f32.mrb[0].mxu0
        %v1439 = vpop.f32.mrb[0].mxu0
        %v1440 = vadd.f32 0.0, %v1439
        %v1441 = vpop.f32.mrb[0].mxu0
        %1442 = vmatprep.mubr.bf16.mxu0 0
        %1443 = vmatmul.mubr.bf16.gmra.mrb[0].mxu0 %v768
        %v1444 = vpop.f32.mrb[0].mxu0
        %v1445 = vadd.f32 0.0, %v1444
        %v1446 = vpop.f32.mrb[0].mxu0
        %v1447 = vpop.f32.mrb[0].mxu0
        %v1448 = vadd.f32 0.0, %v1447
        %v1449 = vpop.f32.mrb[0].mxu0
        %1450 = vmatprep.mubr.bf16.mxu0 0
        %1451 = vmatmul.mubr.bf16.gmra.mrb[0].mxu0 %v771
        %v1452 = vpop.f32.mrb[0].mxu0
        %v1453 = vadd.f32 0.0, %v1452
        %v1454 = vpop.f32.mrb[0].mxu0
        %v1455 = vpop.f32.mrb[0].mxu0
        %v1456 = vadd.f32 0.0, %v1455
        %v1457 = vpop.f32.mrb[0].mxu0
        %1458 = vmatprep.mubr.bf16.mxu0 0
        %1459 = vmatmul.mubr.bf16.gmra.mrb[0].mxu0 %v774
        %v1460 = vpop.f32.mrb[0].mxu0
        %v1461 = vadd.f32 0.0, %v1460
        %v1462 = vpop.f32.mrb[0].mxu0
        %v1463 = vpop.f32.mrb[0].mxu0
        %v1464 = vadd.f32 0.0, %v1463
        %v1465 = vpop.f32.mrb[0].mxu0
        %1466 = vmatprep.mubr.bf16.mxu0 0
        %1467 = vmatmul.mubr.bf16.gmra.mrb[0].mxu0 %v777
        %v1468 = vpop.f32.mrb[0].mxu0
        %v1469 = vadd.f32 0.0, %v1468
        %v1470 = vpop.f32.mrb[0].mxu0
        %v1471 = vpop.f32.mrb[0].mxu0
        %v1472 = vadd.f32 0.0, %v1471
        %v1473 = vpop.f32.mrb[0].mxu0
        %1474 = vmatprep.mubr.bf16.mxu0 0
        %1475 = vmatmul.mubr.bf16.gmra.mrb[0].mxu0 %v780
        %v1476 = vpop.f32.mrb[0].mxu0
        %v1477 = vadd.f32 0.0, %v1476
        %v1478 = vpop.f32.mrb[0].mxu0
        %v1479 = vpop.f32.mrb[0].mxu0
        %v1480 = vadd.f32 0.0, %v1479
        %v1481 = vpop.f32.mrb[0].mxu0
        %1482 = vmatprep.mubr.bf16.mxu0 0
        %1483 = vmatmul.mubr.bf16.gmra.mrb[0].mxu0 %v1325
        %v1484 = vpop.f32.mrb[0].mxu0
        %v1485 = vadd.f32 0.0, %v1484
        %v1486 = vpop.f32.mrb[0].mxu0
        %v1487 = vpop.f32.mrb[0].mxu0
        %v1488 = vadd.f32 0.0, %v1487
        %v1489 = vpop.f32.mrb[0].mxu0
        %1490 = vdwg.mxu0
        %v1491 = vadd.f32 %v1289, %v1365
        %v1492 = vadd.f32 %v1290, %v1368
        %v1493 = vadd.f32 %v1291, %v1373
        %v1494 = vadd.f32 %v1292, %v1376
        %v1495 = vadd.f32 %v1293, %v1381
        %v1496 = vadd.f32 %v1294, %v1384
        %v1497 = vadd.f32 %v1295, %v1389
        %v1498 = vadd.f32 %v1296, %v1392
        %v1499 = vadd.f32 %v1297, %v1397
        %v1500 = vadd.f32 %v1298, %v1400
        %v1501 = vadd.f32 %v1299, %v1405
        %v1502 = vadd.f32 %v1300, %v1408
        %v1503 = vadd.f32 %v1301, %v1413
        %v1504 = vadd.f32 %v1302, %v1416
        %v1505 = vadd.f32 %v1303, %v1421
        %v1506 = vadd.f32 %v1304, %v1424
        %v1507 = vadd.f32 %v1305, %v1429
        %v1508 = vadd.f32 %v1306, %v1432
        %v1509 = vadd.f32 %v1307, %v1437
        %v1510 = vadd.f32 %v1308, %v1440
        %v1511 = vadd.f32 %v1309, %v1445
        %v1512 = vadd.f32 %v1310, %v1448
        %v1513 = vadd.f32 %v1311, %v1453
        %v1514 = vadd.f32 %v1312, %v1456
        %v1515 = vadd.f32 %v1313, %v1461
        %v1516 = vadd.f32 %v1314, %v1464
        %v1517 = vadd.f32 %v1315, %v1469
        %v1518 = vadd.f32 %v1316, %v1472
        %v1519 = vadd.f32 %v1317, %v1477
        %v1520 = vadd.f32 %v1318, %v1480
        %v1521 = vadd.f32 %v1319, %v1485
        %v1522 = vadd.f32 %v1320, %v1488
        %v1526 = vrot.slane %v318, 1
        %v1527 = vrot.slane %v319, 1
        %v1528 = vsel %vm389, %v1526, %v1527
        %v1529 = vrot.slane %v320, 1
        %v1530 = vsel %vm389, %v1527, %v1529
        %v1533 = vpack.c.bf16 %v1530, %v1528
        %s1534 = scalar_lea.vmem %s1, 8
        %v1535 = vld [vmem:[%s1534] sm:$0x3]
        %v1537 = vsel %vm520, %v1533, 0
        %v1540 = vsel %vm569, %v1535, 0
        %1542 = vmatprep.subr.bf16.mxu0 0
        %1543 = vmatpush1.bf16.msra.mxu0 %v1540
        %1544 = vmatprep.subr.bf16.mxu0 0
        %1545 = vmatpush1.bf16.msra.mxu0 0
        %1546 = vmatprep.subr.bf16.mxu0 0
        %1547 = vmatpush1.bf16.msra.mxu0 0
        %1548 = vmatprep.subr.bf16.mxu0 0
        %1549 = vmatpush1.bf16.msra.mxu0 0
        %1550 = vmatprep.subr.bf16.mxu0 0
        %1551 = vmatpush1.bf16.msra.mxu0 0
        %1552 = vmatprep.subr.bf16.mxu0 0
        %1553 = vmatpush1.bf16.msra.mxu0 0
        %1554 = vmatprep.subr.bf16.mxu0 0
        %1555 = vmatpush1.bf16.msra.mxu0 0
        %1556 = vmatprep.subr.bf16.mxu0 0
        %1557 = vmatpush1.bf16.msra.mxu0 0
        %1558 = vmatprep.subr.bf16.mxu0 0
        %1559 = vmatpush1.bf16.msra.mxu0 0
        %1560 = vmatprep.subr.bf16.mxu0 0
        %1561 = vmatpush1.bf16.msra.mxu0 0
        %1562 = vmatprep.subr.bf16.mxu0 0
        %1563 = vmatpush1.bf16.msra.mxu0 0
        %1564 = vmatprep.subr.bf16.mxu0 0
        %1565 = vmatpush1.bf16.msra.mxu0 0
        %1566 = vmatprep.subr.bf16.mxu0 0
        %1567 = vmatpush1.bf16.msra.mxu0 0
        %1568 = vmatprep.subr.bf16.mxu0 0
        %1569 = vmatpush1.bf16.msra.mxu0 0
        %1570 = vmatprep.subr.bf16.mxu0 0
        %1571 = vmatpush1.bf16.msra.mxu0 0
        %1572 = vmatprep.subr.bf16.mxu0 0
        %1573 = vmatpush1.bf16.msra.mxu0 0
        %1574 = vmatprep.mubr.bf16.mxu0 0
        %1575 = vmatmul.mubr.bf16.gmra.mrb[0].mxu0 %v525
        %v1576 = vpop.f32.mrb[0].mxu0
        %v1577 = vadd.f32 0.0, %v1576
        %v1578 = vpop.f32.mrb[0].mxu0
        %v1579 = vpop.f32.mrb[0].mxu0
        %v1580 = vadd.f32 0.0, %v1579
        %v1581 = vpop.f32.mrb[0].mxu0
        %1582 = vmatprep.mubr.bf16.mxu0 0
        %1583 = vmatmul.mubr.bf16.gmra.mrb[0].mxu0 %v528
        %v1584 = vpop.f32.mrb[0].mxu0
        %v1585 = vadd.f32 0.0, %v1584
        %v1586 = vpop.f32.mrb[0].mxu0
        %v1587 = vpop.f32.mrb[0].mxu0
        %v1588 = vadd.f32 0.0, %v1587
        %v1589 = vpop.f32.mrb[0].mxu0
        %1590 = vmatprep.mubr.bf16.mxu0 0
        %1591 = vmatmul.mubr.bf16.gmra.mrb[0].mxu0 %v531
        %v1592 = vpop.f32.mrb[0].mxu0
        %v1593 = vadd.f32 0.0, %v1592
        %v1594 = vpop.f32.mrb[0].mxu0
        %v1595 = vpop.f32.mrb[0].mxu0
        %v1596 = vadd.f32 0.0, %v1595
        %v1597 = vpop.f32.mrb[0].mxu0
        %1598 = vmatprep.mubr.bf16.mxu0 0
        %1599 = vmatmul.mubr.bf16.gmra.mrb[0].mxu0 %v534
        %v1600 = vpop.f32.mrb[0].mxu0
        %v1601 = vadd.f32 0.0, %v1600
        %v1602 = vpop.f32.mrb[0].mxu0
        %v1603 = vpop.f32.mrb[0].mxu0
        %v1604 = vadd.f32 0.0, %v1603
        %v1605 = vpop.f32.mrb[0].mxu0
        %1606 = vmatprep.mubr.bf16.mxu0 0
        %1607 = vmatmul.mubr.bf16.gmra.mrb[0].mxu0 %v537
        %v1608 = vpop.f32.mrb[0].mxu0
        %v1609 = vadd.f32 0.0, %v1608
        %v1610 = vpop.f32.mrb[0].mxu0
        %v1611 = vpop.f32.mrb[0].mxu0
        %v1612 = vadd.f32 0.0, %v1611
        %v1613 = vpop.f32.mrb[0].mxu0
        %1614 = vmatprep.mubr.bf16.mxu0 0
        %1615 = vmatmul.mubr.bf16.gmra.mrb[0].mxu0 %v540
        %v1616 = vpop.f32.mrb[0].mxu0
        %v1617 = vadd.f32 0.0, %v1616
        %v1618 = vpop.f32.mrb[0].mxu0
        %v1619 = vpop.f32.mrb[0].mxu0
        %v1620 = vadd.f32 0.0, %v1619
        %v1621 = vpop.f32.mrb[0].mxu0
        %1622 = vmatprep.mubr.bf16.mxu0 0
        %1623 = vmatmul.mubr.bf16.gmra.mrb[0].mxu0 %v543
        %v1624 = vpop.f32.mrb[0].mxu0
        %v1625 = vadd.f32 0.0, %v1624
        %v1626 = vpop.f32.mrb[0].mxu0
        %v1627 = vpop.f32.mrb[0].mxu0
        %v1628 = vadd.f32 0.0, %v1627
        %v1629 = vpop.f32.mrb[0].mxu0
        %1630 = vmatprep.mubr.bf16.mxu0 0
        %1631 = vmatmul.mubr.bf16.gmra.mrb[0].mxu0 %v546
        %v1632 = vpop.f32.mrb[0].mxu0
        %v1633 = vadd.f32 0.0, %v1632
        %v1634 = vpop.f32.mrb[0].mxu0
        %v1635 = vpop.f32.mrb[0].mxu0
        %v1636 = vadd.f32 0.0, %v1635
        %v1637 = vpop.f32.mrb[0].mxu0
        %1638 = vmatprep.mubr.bf16.mxu0 0
        %1639 = vmatmul.mubr.bf16.gmra.mrb[0].mxu0 %v549
        %v1640 = vpop.f32.mrb[0].mxu0
        %v1641 = vadd.f32 0.0, %v1640
        %v1642 = vpop.f32.mrb[0].mxu0
        %v1643 = vpop.f32.mrb[0].mxu0
        %v1644 = vadd.f32 0.0, %v1643
        %v1645 = vpop.f32.mrb[0].mxu0
        %1646 = vmatprep.mubr.bf16.mxu0 0
        %1647 = vmatmul.mubr.bf16.gmra.mrb[0].mxu0 %v552
        %v1648 = vpop.f32.mrb[0].mxu0
        %v1649 = vadd.f32 0.0, %v1648
        %v1650 = vpop.f32.mrb[0].mxu0
        %v1651 = vpop.f32.mrb[0].mxu0
        %v1652 = vadd.f32 0.0, %v1651
        %v1653 = vpop.f32.mrb[0].mxu0
        %1654 = vmatprep.mubr.bf16.mxu0 0
        %1655 = vmatmul.mubr.bf16.gmra.mrb[0].mxu0 %v555
        %v1656 = vpop.f32.mrb[0].mxu0
        %v1657 = vadd.f32 0.0, %v1656
        %v1658 = vpop.f32.mrb[0].mxu0
        %v1659 = vpop.f32.mrb[0].mxu0
        %v1660 = vadd.f32 0.0, %v1659
        %v1661 = vpop.f32.mrb[0].mxu0
        %1662 = vmatprep.mubr.bf16.mxu0 0
        %1663 = vmatmul.mubr.bf16.gmra.mrb[0].mxu0 %v558
        %v1664 = vpop.f32.mrb[0].mxu0
        %v1665 = vadd.f32 0.0, %v1664
        %v1666 = vpop.f32.mrb[0].mxu0
        %v1667 = vpop.f32.mrb[0].mxu0
        %v1668 = vadd.f32 0.0, %v1667
        %v1669 = vpop.f32.mrb[0].mxu0
        %1670 = vmatprep.mubr.bf16.mxu0 0
        %1671 = vmatmul.mubr.bf16.gmra.mrb[0].mxu0 %v561
        %v1672 = vpop.f32.mrb[0].mxu0
        %v1673 = vadd.f32 0.0, %v1672
        %v1674 = vpop.f32.mrb[0].mxu0
        %v1675 = vpop.f32.mrb[0].mxu0
        %v1676 = vadd.f32 0.0, %v1675
        %v1677 = vpop.f32.mrb[0].mxu0
        %1678 = vmatprep.mubr.bf16.mxu0 0
        %1679 = vmatmul.mubr.bf16.gmra.mrb[0].mxu0 %v564
        %v1680 = vpop.f32.mrb[0].mxu0
        %v1681 = vadd.f32 0.0, %v1680
        %v1682 = vpop.f32.mrb[0].mxu0
        %v1683 = vpop.f32.mrb[0].mxu0
        %v1684 = vadd.f32 0.0, %v1683
        %v1685 = vpop.f32.mrb[0].mxu0
        %1686 = vmatprep.mubr.bf16.mxu0 0
        %1687 = vmatmul.mubr.bf16.gmra.mrb[0].mxu0 %v567
        %v1688 = vpop.f32.mrb[0].mxu0
        %v1689 = vadd.f32 0.0, %v1688
        %v1690 = vpop.f32.mrb[0].mxu0
        %v1691 = vpop.f32.mrb[0].mxu0
        %v1692 = vadd.f32 0.0, %v1691
        %v1693 = vpop.f32.mrb[0].mxu0
        %1694 = vmatprep.mubr.bf16.mxu0 0
        %1695 = vmatmul.mubr.bf16.gmra.mrb[0].mxu0 %v1537
        %v1696 = vpop.f32.mrb[0].mxu0
        %v1697 = vadd.f32 0.0, %v1696
        %v1698 = vpop.f32.mrb[0].mxu0
        %v1699 = vpop.f32.mrb[0].mxu0
        %v1700 = vadd.f32 0.0, %v1699
        %v1701 = vpop.f32.mrb[0].mxu0
        %1702 = vdwg.mxu0
        %v1703 = vadd.f32 %v1491, %v1577
        %v1704 = vadd.f32 %v1492, %v1580
        %v1705 = vadd.f32 %v1493, %v1585
        %v1706 = vadd.f32 %v1494, %v1588
        %v1707 = vadd.f32 %v1495, %v1593
        %v1708 = vadd.f32 %v1496, %v1596
        %v1709 = vadd.f32 %v1497, %v1601
        %v1710 = vadd.f32 %v1498, %v1604
        %v1711 = vadd.f32 %v1499, %v1609
        %v1712 = vadd.f32 %v1500, %v1612
        %v1713 = vadd.f32 %v1501, %v1617
        %v1714 = vadd.f32 %v1502, %v1620
        %v1715 = vadd.f32 %v1503, %v1625
        %v1716 = vadd.f32 %v1504, %v1628
        %v1717 = vadd.f32 %v1505, %v1633
        %v1718 = vadd.f32 %v1506, %v1636
        %v1719 = vadd.f32 %v1507, %v1641
        %v1720 = vadd.f32 %v1508, %v1644
        %v1721 = vadd.f32 %v1509, %v1649
        %v1722 = vadd.f32 %v1510, %v1652
        %v1723 = vadd.f32 %v1511, %v1657
        %v1724 = vadd.f32 %v1512, %v1660
        %v1725 = vadd.f32 %v1513, %v1665
        %v1726 = vadd.f32 %v1514, %v1668
        %v1727 = vadd.f32 %v1515, %v1673
        %v1728 = vadd.f32 %v1516, %v1676
        %v1729 = vadd.f32 %v1517, %v1681
        %v1730 = vadd.f32 %v1518, %v1684
        %v1731 = vadd.f32 %v1519, %v1689
        %v1732 = vadd.f32 %v1520, %v1692
        %v1733 = vadd.f32 %v1521, %v1697
        %v1734 = vadd.f32 %v1522, %v1700
        %v1735 = vrot.slane %v318, 2
        %v1736 = vrot.slane %v319, 2
        %v1737 = vsel %vm946, %v1735, %v1736
        %v1738 = vrot.slane %v320, 2
        %v1739 = vsel %vm946, %v1736, %v1738
        %v1742 = vpack.c.bf16 %v1739, %v1737
        %s1743 = scalar_lea.vmem %s1, 10
        %v1744 = vld [vmem:[%s1743] sm:$0x3]
        %v1746 = vsel %vm520, %v1742, 0
        %v1749 = vsel %vm569, %v1744, 0
        %1751 = vmatprep.subr.bf16.mxu0 0
        %1752 = vmatpush1.bf16.msra.mxu0 %v1749
        %1753 = vmatprep.subr.bf16.mxu0 0
        %1754 = vmatpush1.bf16.msra.mxu0 0
        %1755 = vmatprep.subr.bf16.mxu0 0
        %1756 = vmatpush1.bf16.msra.mxu0 0
        %1757 = vmatprep.subr.bf16.mxu0 0
        %1758 = vmatpush1.bf16.msra.mxu0 0
        %1759 = vmatprep.subr.bf16.mxu0 0
        %1760 = vmatpush1.bf16.msra.mxu0 0
        %1761 = vmatprep.subr.bf16.mxu0 0
        %1762 = vmatpush1.bf16.msra.mxu0 0
        %1763 = vmatprep.subr.bf16.mxu0 0
        %1764 = vmatpush1.bf16.msra.mxu0 0
        %1765 = vmatprep.subr.bf16.mxu0 0
        %1766 = vmatpush1.bf16.msra.mxu0 0
        %1767 = vmatprep.subr.bf16.mxu0 0
        %1768 = vmatpush1.bf16.msra.mxu0 0
        %1769 = vmatprep.subr.bf16.mxu0 0
        %1770 = vmatpush1.bf16.msra.mxu0 0
        %1771 = vmatprep.subr.bf16.mxu0 0
        %1772 = vmatpush1.bf16.msra.mxu0 0
        %1773 = vmatprep.subr.bf16.mxu0 0
        %1774 = vmatpush1.bf16.msra.mxu0 0
        %1775 = vmatprep.subr.bf16.mxu0 0
        %1776 = vmatpush1.bf16.msra.mxu0 0
        %1777 = vmatprep.subr.bf16.mxu0 0
        %1778 = vmatpush1.bf16.msra.mxu0 0
        %1779 = vmatprep.subr.bf16.mxu0 0
        %1780 = vmatpush1.bf16.msra.mxu0 0
        %1781 = vmatprep.subr.bf16.mxu0 0
        %1782 = vmatpush1.bf16.msra.mxu0 0
        %1783 = vmatprep.mubr.bf16.mxu0 0
        %1784 = vmatmul.mubr.bf16.gmra.mrb[0].mxu0 %v1081
        %v1785 = vpop.f32.mrb[0].mxu0
        %v1786 = vadd.f32 0.0, %v1785
        %v1787 = vpop.f32.mrb[0].mxu0
        %v1788 = vpop.f32.mrb[0].mxu0
        %v1789 = vadd.f32 0.0, %v1788
        %v1790 = vpop.f32.mrb[0].mxu0
        %1791 = vmatprep.mubr.bf16.mxu0 0
        %1792 = vmatmul.mubr.bf16.gmra.mrb[0].mxu0 %v1084
        %v1793 = vpop.f32.mrb[0].mxu0
        %v1794 = vadd.f32 0.0, %v1793
        %v1795 = vpop.f32.mrb[0].mxu0
        %v1796 = vpop.f32.mrb[0].mxu0
        %v1797 = vadd.f32 0.0, %v1796
        %v1798 = vpop.f32.mrb[0].mxu0
        %1799 = vmatprep.mubr.bf16.mxu0 0
        %1800 = vmatmul.mubr.bf16.gmra.mrb[0].mxu0 %v1087
        %v1801 = vpop.f32.mrb[0].mxu0
        %v1802 = vadd.f32 0.0, %v1801
        %v1803 = vpop.f32.mrb[0].mxu0
        %v1804 = vpop.f32.mrb[0].mxu0
        %v1805 = vadd.f32 0.0, %v1804
        %v1806 = vpop.f32.mrb[0].mxu0
        %1807 = vmatprep.mubr.bf16.mxu0 0
        %1808 = vmatmul.mubr.bf16.gmra.mrb[0].mxu0 %v1090
        %v1809 = vpop.f32.mrb[0].mxu0
        %v1810 = vadd.f32 0.0, %v1809
        %v1811 = vpop.f32.mrb[0].mxu0
        %v1812 = vpop.f32.mrb[0].mxu0
        %v1813 = vadd.f32 0.0, %v1812
        %v1814 = vpop.f32.mrb[0].mxu0
        %1815 = vmatprep.mubr.bf16.mxu0 0
        %1816 = vmatmul.mubr.bf16.gmra.mrb[0].mxu0 %v1093
        %v1817 = vpop.f32.mrb[0].mxu0
        %v1818 = vadd.f32 0.0, %v1817
        %v1819 = vpop.f32.mrb[0].mxu0
        %v1820 = vpop.f32.mrb[0].mxu0
        %v1821 = vadd.f32 0.0, %v1820
        %v1822 = vpop.f32.mrb[0].mxu0
        %1823 = vmatprep.mubr.bf16.mxu0 0
        %1824 = vmatmul.mubr.bf16.gmra.mrb[0].mxu0 %v1096
        %v1825 = vpop.f32.mrb[0].mxu0
        %v1826 = vadd.f32 0.0, %v1825
        %v1827 = vpop.f32.mrb[0].mxu0
        %v1828 = vpop.f32.mrb[0].mxu0
        %v1829 = vadd.f32 0.0, %v1828
        %v1830 = vpop.f32.mrb[0].mxu0
        %1831 = vmatprep.mubr.bf16.mxu0 0
        %1832 = vmatmul.mubr.bf16.gmra.mrb[0].mxu0 %v1099
        %v1833 = vpop.f32.mrb[0].mxu0
        %v1834 = vadd.f32 0.0, %v1833
        %v1835 = vpop.f32.mrb[0].mxu0
        %v1836 = vpop.f32.mrb[0].mxu0
        %v1837 = vadd.f32 0.0, %v1836
        %v1838 = vpop.f32.mrb[0].mxu0
        %1839 = vmatprep.mubr.bf16.mxu0 0
        %1840 = vmatmul.mubr.bf16.gmra.mrb[0].mxu0 %v1102
        %v1841 = vpop.f32.mrb[0].mxu0
        %v1842 = vadd.f32 0.0, %v1841
        %v1843 = vpop.f32.mrb[0].mxu0
        %v1844 = vpop.f32.mrb[0].mxu0
        %v1845 = vadd.f32 0.0, %v1844
        %v1846 = vpop.f32.mrb[0].mxu0
        %1847 = vmatprep.mubr.bf16.mxu0 0
        %1848 = vmatmul.mubr.bf16.gmra.mrb[0].mxu0 %v1105
        %v1849 = vpop.f32.mrb[0].mxu0
        %v1850 = vadd.f32 0.0, %v1849
        %v1851 = vpop.f32.mrb[0].mxu0
        %v1852 = vpop.f32.mrb[0].mxu0
        %v1853 = vadd.f32 0.0, %v1852
        %v1854 = vpop.f32.mrb[0].mxu0
        %1855 = vmatprep.mubr.bf16.mxu0 0
        %1856 = vmatmul.mubr.bf16.gmra.mrb[0].mxu0 %v1108
        %v1857 = vpop.f32.mrb[0].mxu0
        %v1858 = vadd.f32 0.0, %v1857
        %v1859 = vpop.f32.mrb[0].mxu0
        %v1860 = vpop.f32.mrb[0].mxu0
        %v1861 = vadd.f32 0.0, %v1860
        %v1862 = vpop.f32.mrb[0].mxu0
        %1863 = vmatprep.mubr.bf16.mxu0 0
        %1864 = vmatmul.mubr.bf16.gmra.mrb[0].mxu0 %v1111
        %v1865 = vpop.f32.mrb[0].mxu0
        %v1866 = vadd.f32 0.0, %v1865
        %v1867 = vpop.f32.mrb[0].mxu0
        %v1868 = vpop.f32.mrb[0].mxu0
        %v1869 = vadd.f32 0.0, %v1868
        %v1870 = vpop.f32.mrb[0].mxu0
        %1871 = vmatprep.mubr.bf16.mxu0 0
        %1872 = vmatmul.mubr.bf16.gmra.mrb[0].mxu0 %v1114
        %v1873 = vpop.f32.mrb[0].mxu0
        %v1874 = vadd.f32 0.0, %v1873
        %v1875 = vpop.f32.mrb[0].mxu0
        %v1876 = vpop.f32.mrb[0].mxu0
        %v1877 = vadd.f32 0.0, %v1876
        %v1878 = vpop.f32.mrb[0].mxu0
        %1879 = vmatprep.mubr.bf16.mxu0 0
        %1880 = vmatmul.mubr.bf16.gmra.mrb[0].mxu0 %v1117
        %v1881 = vpop.f32.mrb[0].mxu0
        %v1882 = vadd.f32 0.0, %v1881
        %v1883 = vpop.f32.mrb[0].mxu0
        %v1884 = vpop.f32.mrb[0].mxu0
        %v1885 = vadd.f32 0.0, %v1884
        %v1886 = vpop.f32.mrb[0].mxu0
        %1887 = vmatprep.mubr.bf16.mxu0 0
        %1888 = vmatmul.mubr.bf16.gmra.mrb[0].mxu0 %v1120
        %v1889 = vpop.f32.mrb[0].mxu0
        %v1890 = vadd.f32 0.0, %v1889
        %v1891 = vpop.f32.mrb[0].mxu0
        %v1892 = vpop.f32.mrb[0].mxu0
        %v1893 = vadd.f32 0.0, %v1892
        %v1894 = vpop.f32.mrb[0].mxu0
        %1895 = vmatprep.mubr.bf16.mxu0 0
        %1896 = vmatmul.mubr.bf16.gmra.mrb[0].mxu0 %v1123
        %v1897 = vpop.f32.mrb[0].mxu0
        %v1898 = vadd.f32 0.0, %v1897
        %v1899 = vpop.f32.mrb[0].mxu0
        %v1900 = vpop.f32.mrb[0].mxu0
        %v1901 = vadd.f32 0.0, %v1900
        %v1902 = vpop.f32.mrb[0].mxu0
        %1903 = vmatprep.mubr.bf16.mxu0 0
        %1904 = vmatmul.mubr.bf16.gmra.mrb[0].mxu0 %v1746
        %v1905 = vpop.f32.mrb[0].mxu0
        %v1906 = vadd.f32 0.0, %v1905
        %v1907 = vpop.f32.mrb[0].mxu0
        %v1908 = vpop.f32.mrb[0].mxu0
        %v1909 = vadd.f32 0.0, %v1908
        %v1910 = vpop.f32.mrb[0].mxu0
        %1911 = vdwg.mxu0
        %v1912 = vadd.f32 %v1703, %v1786
        %v1913 = vadd.f32 %v1704, %v1789
        %v1914 = vadd.f32 %v1705, %v1794
        %v1915 = vadd.f32 %v1706, %v1797
        %v1916 = vadd.f32 %v1707, %v1802
        %v1917 = vadd.f32 %v1708, %v1805
        %v1918 = vadd.f32 %v1709, %v1810
        %v1919 = vadd.f32 %v1710, %v1813
        %v1920 = vadd.f32 %v1711, %v1818
        %v1921 = vadd.f32 %v1712, %v1821
        %v1922 = vadd.f32 %v1713, %v1826
        %v1923 = vadd.f32 %v1714, %v1829
        %v1924 = vadd.f32 %v1715, %v1834
        %v1925 = vadd.f32 %v1716, %v1837
        %v1926 = vadd.f32 %v1717, %v1842
        %v1927 = vadd.f32 %v1718, %v1845
        %v1928 = vadd.f32 %v1719, %v1850
        %v1929 = vadd.f32 %v1720, %v1853
        %v1930 = vadd.f32 %v1721, %v1858
        %v1931 = vadd.f32 %v1722, %v1861
        %v1932 = vadd.f32 %v1723, %v1866
        %v1933 = vadd.f32 %v1724, %v1869
        %v1934 = vadd.f32 %v1725, %v1874
        %v1935 = vadd.f32 %v1726, %v1877
        %v1936 = vadd.f32 %v1727, %v1882
        %v1937 = vadd.f32 %v1728, %v1885
        %v1938 = vadd.f32 %v1729, %v1890
        %v1939 = vadd.f32 %v1730, %v1893
        %v1940 = vadd.f32 %v1731, %v1898
        %v1941 = vadd.f32 %v1732, %v1901
        %v1942 = vadd.f32 %v1733, %v1906
        %v1943 = vadd.f32 %v1734, %v1909
        %v1944 = vpack.c.bf16 %v322, %v321
        %s1945 = scalar_lea.vmem %s1, 12
        %v1946 = vld [vmem:[%s1945] sm:$0x3]
        %v1948 = vsel %vm520, %v1944, 0
        %v1951 = vsel %vm569, %v1946, 0
        %1953 = vmatprep.subr.bf16.mxu0 0
        %1954 = vmatpush1.bf16.msra.mxu0 %v1951
        %1955 = vmatprep.subr.bf16.mxu0 0
        %1956 = vmatpush1.bf16.msra.mxu0 0
        %1957 = vmatprep.subr.bf16.mxu0 0
        %1958 = vmatpush1.bf16.msra.mxu0 0
        %1959 = vmatprep.subr.bf16.mxu0 0
        %1960 = vmatpush1.bf16.msra.mxu0 0
        %1961 = vmatprep.subr.bf16.mxu0 0
        %1962 = vmatpush1.bf16.msra.mxu0 0
        %1963 = vmatprep.subr.bf16.mxu0 0
        %1964 = vmatpush1.bf16.msra.mxu0 0
        %1965 = vmatprep.subr.bf16.mxu0 0
        %1966 = vmatpush1.bf16.msra.mxu0 0
        %1967 = vmatprep.subr.bf16.mxu0 0
        %1968 = vmatpush1.bf16.msra.mxu0 0
        %1969 = vmatprep.subr.bf16.mxu0 0
        %1970 = vmatpush1.bf16.msra.mxu0 0
        %1971 = vmatprep.subr.bf16.mxu0 0
        %1972 = vmatpush1.bf16.msra.mxu0 0
        %1973 = vmatprep.subr.bf16.mxu0 0
        %1974 = vmatpush1.bf16.msra.mxu0 0
        %1975 = vmatprep.subr.bf16.mxu0 0
        %1976 = vmatpush1.bf16.msra.mxu0 0
        %1977 = vmatprep.subr.bf16.mxu0 0
        %1978 = vmatpush1.bf16.msra.mxu0 0
        %1979 = vmatprep.subr.bf16.mxu0 0
        %1980 = vmatpush1.bf16.msra.mxu0 0
        %1981 = vmatprep.subr.bf16.mxu0 0
        %1982 = vmatpush1.bf16.msra.mxu0 0
        %1983 = vmatprep.subr.bf16.mxu0 0
        %1984 = vmatpush1.bf16.msra.mxu0 0
        %1985 = vmatprep.mubr.bf16.mxu0 0
        %1986 = vmatmul.mubr.bf16.gmra.mrb[0].mxu0 %v741
        %v1987 = vpop.f32.mrb[0].mxu0
        %v1988 = vadd.f32 0.0, %v1987
        %v1989 = vpop.f32.mrb[0].mxu0
        %v1990 = vpop.f32.mrb[0].mxu0
        %v1991 = vadd.f32 0.0, %v1990
        %v1992 = vpop.f32.mrb[0].mxu0
        %1993 = vmatprep.mubr.bf16.mxu0 0
        %1994 = vmatmul.mubr.bf16.gmra.mrb[0].mxu0 %v744
        %v1995 = vpop.f32.mrb[0].mxu0
        %v1996 = vadd.f32 0.0, %v1995
        %v1997 = vpop.f32.mrb[0].mxu0
        %v1998 = vpop.f32.mrb[0].mxu0
        %v1999 = vadd.f32 0.0, %v1998
        %v2000 = vpop.f32.mrb[0].mxu0
        %2001 = vmatprep.mubr.bf16.mxu0 0
        %2002 = vmatmul.mubr.bf16.gmra.mrb[0].mxu0 %v747
        %v2003 = vpop.f32.mrb[0].mxu0
        %v2004 = vadd.f32 0.0, %v2003
        %v2005 = vpop.f32.mrb[0].mxu0
        %v2006 = vpop.f32.mrb[0].mxu0
        %v2007 = vadd.f32 0.0, %v2006
        %v2008 = vpop.f32.mrb[0].mxu0
        %2009 = vmatprep.mubr.bf16.mxu0 0
        %2010 = vmatmul.mubr.bf16.gmra.mrb[0].mxu0 %v750
        %v2011 = vpop.f32.mrb[0].mxu0
        %v2012 = vadd.f32 0.0, %v2011
        %v2013 = vpop.f32.mrb[0].mxu0
        %v2014 = vpop.f32.mrb[0].mxu0
        %v2015 = vadd.f32 0.0, %v2014
        %v2016 = vpop.f32.mrb[0].mxu0
        %2017 = vmatprep.mubr.bf16.mxu0 0
        %2018 = vmatmul.mubr.bf16.gmra.mrb[0].mxu0 %v753
        %v2019 = vpop.f32.mrb[0].mxu0
        %v2020 = vadd.f32 0.0, %v2019
        %v2021 = vpop.f32.mrb[0].mxu0
        %v2022 = vpop.f32.mrb[0].mxu0
        %v2023 = vadd.f32 0.0, %v2022
        %v2024 = vpop.f32.mrb[0].mxu0
        %2025 = vmatprep.mubr.bf16.mxu0 0
        %2026 = vmatmul.mubr.bf16.gmra.mrb[0].mxu0 %v756
        %v2027 = vpop.f32.mrb[0].mxu0
        %v2028 = vadd.f32 0.0, %v2027
        %v2029 = vpop.f32.mrb[0].mxu0
        %v2030 = vpop.f32.mrb[0].mxu0
        %v2031 = vadd.f32 0.0, %v2030
        %v2032 = vpop.f32.mrb[0].mxu0
        %2033 = vmatprep.mubr.bf16.mxu0 0
        %2034 = vmatmul.mubr.bf16.gmra.mrb[0].mxu0 %v759
        %v2035 = vpop.f32.mrb[0].mxu0
        %v2036 = vadd.f32 0.0, %v2035
        %v2037 = vpop.f32.mrb[0].mxu0
        %v2038 = vpop.f32.mrb[0].mxu0
        %v2039 = vadd.f32 0.0, %v2038
        %v2040 = vpop.f32.mrb[0].mxu0
        %2041 = vmatprep.mubr.bf16.mxu0 0
        %2042 = vmatmul.mubr.bf16.gmra.mrb[0].mxu0 %v762
        %v2043 = vpop.f32.mrb[0].mxu0
        %v2044 = vadd.f32 0.0, %v2043
        %v2045 = vpop.f32.mrb[0].mxu0
        %v2046 = vpop.f32.mrb[0].mxu0
        %v2047 = vadd.f32 0.0, %v2046
        %v2048 = vpop.f32.mrb[0].mxu0
        %2049 = vmatprep.mubr.bf16.mxu0 0
        %2050 = vmatmul.mubr.bf16.gmra.mrb[0].mxu0 %v765
        %v2051 = vpop.f32.mrb[0].mxu0
        %v2052 = vadd.f32 0.0, %v2051
        %v2053 = vpop.f32.mrb[0].mxu0
        %v2054 = vpop.f32.mrb[0].mxu0
        %v2055 = vadd.f32 0.0, %v2054
        %v2056 = vpop.f32.mrb[0].mxu0
        %2057 = vmatprep.mubr.bf16.mxu0 0
        %2058 = vmatmul.mubr.bf16.gmra.mrb[0].mxu0 %v768
        %v2059 = vpop.f32.mrb[0].mxu0
        %v2060 = vadd.f32 0.0, %v2059
        %v2061 = vpop.f32.mrb[0].mxu0
        %v2062 = vpop.f32.mrb[0].mxu0
        %v2063 = vadd.f32 0.0, %v2062
        %v2064 = vpop.f32.mrb[0].mxu0
        %2065 = vmatprep.mubr.bf16.mxu0 0
        %2066 = vmatmul.mubr.bf16.gmra.mrb[0].mxu0 %v771
        %v2067 = vpop.f32.mrb[0].mxu0
        %v2068 = vadd.f32 0.0, %v2067
        %v2069 = vpop.f32.mrb[0].mxu0
        %v2070 = vpop.f32.mrb[0].mxu0
        %v2071 = vadd.f32 0.0, %v2070
        %v2072 = vpop.f32.mrb[0].mxu0
        %2073 = vmatprep.mubr.bf16.mxu0 0
        %2074 = vmatmul.mubr.bf16.gmra.mrb[0].mxu0 %v774
        %v2075 = vpop.f32.mrb[0].mxu0
        %v2076 = vadd.f32 0.0, %v2075
        %v2077 = vpop.f32.mrb[0].mxu0
        %v2078 = vpop.f32.mrb[0].mxu0
        %v2079 = vadd.f32 0.0, %v2078
        %v2080 = vpop.f32.mrb[0].mxu0
        %2081 = vmatprep.mubr.bf16.mxu0 0
        %2082 = vmatmul.mubr.bf16.gmra.mrb[0].mxu0 %v777
        %v2083 = vpop.f32.mrb[0].mxu0
        %v2084 = vadd.f32 0.0, %v2083
        %v2085 = vpop.f32.mrb[0].mxu0
        %v2086 = vpop.f32.mrb[0].mxu0
        %v2087 = vadd.f32 0.0, %v2086
        %v2088 = vpop.f32.mrb[0].mxu0
        %2089 = vmatprep.mubr.bf16.mxu0 0
        %2090 = vmatmul.mubr.bf16.gmra.mrb[0].mxu0 %v780
        %v2091 = vpop.f32.mrb[0].mxu0
        %v2092 = vadd.f32 0.0, %v2091
        %v2093 = vpop.f32.mrb[0].mxu0
        %v2094 = vpop.f32.mrb[0].mxu0
        %v2095 = vadd.f32 0.0, %v2094
        %v2096 = vpop.f32.mrb[0].mxu0
        %2097 = vmatprep.mubr.bf16.mxu0 0
        %2098 = vmatmul.mubr.bf16.gmra.mrb[0].mxu0 %v1325
        %v2099 = vpop.f32.mrb[0].mxu0
        %v2100 = vadd.f32 0.0, %v2099
        %v2101 = vpop.f32.mrb[0].mxu0
        %v2102 = vpop.f32.mrb[0].mxu0
        %v2103 = vadd.f32 0.0, %v2102
        %v2104 = vpop.f32.mrb[0].mxu0
        %2105 = vmatprep.mubr.bf16.mxu0 0
        %2106 = vmatmul.mubr.bf16.gmra.mrb[0].mxu0 %v1948
        %v2107 = vpop.f32.mrb[0].mxu0
        %v2108 = vadd.f32 0.0, %v2107
        %v2109 = vpop.f32.mrb[0].mxu0
        %v2110 = vpop.f32.mrb[0].mxu0
        %v2111 = vadd.f32 0.0, %v2110
        %v2112 = vpop.f32.mrb[0].mxu0
        %2113 = vdwg.mxu0
        %v2114 = vadd.f32 %v1912, %v1988
        %v2115 = vadd.f32 %v1913, %v1991
        %v2116 = vadd.f32 %v1914, %v1996
        %v2117 = vadd.f32 %v1915, %v1999
        %v2118 = vadd.f32 %v1916, %v2004
        %v2119 = vadd.f32 %v1917, %v2007
        %v2120 = vadd.f32 %v1918, %v2012
        %v2121 = vadd.f32 %v1919, %v2015
        %v2122 = vadd.f32 %v1920, %v2020
        %v2123 = vadd.f32 %v1921, %v2023
        %v2124 = vadd.f32 %v1922, %v2028
        %v2125 = vadd.f32 %v1923, %v2031
        %v2126 = vadd.f32 %v1924, %v2036
        %v2127 = vadd.f32 %v1925, %v2039
        %v2128 = vadd.f32 %v1926, %v2044
        %v2129 = vadd.f32 %v1927, %v2047
        %v2130 = vadd.f32 %v1928, %v2052
        %v2131 = vadd.f32 %v1929, %v2055
        %v2132 = vadd.f32 %v1930, %v2060
        %v2133 = vadd.f32 %v1931, %v2063
        %v2134 = vadd.f32 %v1932, %v2068
        %v2135 = vadd.f32 %v1933, %v2071
        %v2136 = vadd.f32 %v1934, %v2076
        %v2137 = vadd.f32 %v1935, %v2079
        %v2138 = vadd.f32 %v1936, %v2084
        %v2139 = vadd.f32 %v1937, %v2087
        %v2140 = vadd.f32 %v1938, %v2092
        %v2141 = vadd.f32 %v1939, %v2095
        %v2142 = vadd.f32 %v1940, %v2100
        %v2143 = vadd.f32 %v1941, %v2103
        %v2144 = vadd.f32 %v1942, %v2108
        %v2145 = vadd.f32 %v1943, %v2111
        %v2149 = vrot.slane %v321, 1
        %v2150 = vrot.slane %v322, 1
        %v2151 = vsel %vm389, %v2149, %v2150
        %v2152 = vrot.slane %v323, 1
        %v2153 = vsel %vm389, %v2150, %v2152
        %v2156 = vpack.c.bf16 %v2153, %v2151
        %s2157 = scalar_lea.vmem %s1, 14
        %v2158 = vld [vmem:[%s2157] sm:$0x3]
        %v2160 = vsel %vm520, %v2156, 0
        %v2163 = vsel %vm569, %v2158, 0
        %2165 = vmatprep.subr.bf16.mxu0 0
        %2166 = vmatpush1.bf16.msra.mxu0 %v2163
        %2167 = vmatprep.subr.bf16.mxu0 0
        %2168 = vmatpush1.bf16.msra.mxu0 0
        %2169 = vmatprep.subr.bf16.mxu0 0
        %2170 = vmatpush1.bf16.msra.mxu0 0
        %2171 = vmatprep.subr.bf16.mxu0 0
        %2172 = vmatpush1.bf16.msra.mxu0 0
        %2173 = vmatprep.subr.bf16.mxu0 0
        %2174 = vmatpush1.bf16.msra.mxu0 0
        %2175 = vmatprep.subr.bf16.mxu0 0
        %2176 = vmatpush1.bf16.msra.mxu0 0
        %2177 = vmatprep.subr.bf16.mxu0 0
        %2178 = vmatpush1.bf16.msra.mxu0 0
        %2179 = vmatprep.subr.bf16.mxu0 0
        %2180 = vmatpush1.bf16.msra.mxu0 0
        %2181 = vmatprep.subr.bf16.mxu0 0
        %2182 = vmatpush1.bf16.msra.mxu0 0
        %2183 = vmatprep.subr.bf16.mxu0 0
        %2184 = vmatpush1.bf16.msra.mxu0 0
        %2185 = vmatprep.subr.bf16.mxu0 0
        %2186 = vmatpush1.bf16.msra.mxu0 0
        %2187 = vmatprep.subr.bf16.mxu0 0
        %2188 = vmatpush1.bf16.msra.mxu0 0
        %2189 = vmatprep.subr.bf16.mxu0 0
        %2190 = vmatpush1.bf16.msra.mxu0 0
        %2191 = vmatprep.subr.bf16.mxu0 0
        %2192 = vmatpush1.bf16.msra.mxu0 0
        %2193 = vmatprep.subr.bf16.mxu0 0
        %2194 = vmatpush1.bf16.msra.mxu0 0
        %2195 = vmatprep.subr.bf16.mxu0 0
        %2196 = vmatpush1.bf16.msra.mxu0 0
        %2197 = vmatprep.mubr.bf16.mxu0 0
        %2198 = vmatmul.mubr.bf16.gmra.mrb[0].mxu0 %v528
        %v2199 = vpop.f32.mrb[0].mxu0
        %v2200 = vadd.f32 0.0, %v2199
        %v2201 = vpop.f32.mrb[0].mxu0
        %v2202 = vpop.f32.mrb[0].mxu0
        %v2203 = vadd.f32 0.0, %v2202
        %v2204 = vpop.f32.mrb[0].mxu0
        %2205 = vmatprep.mubr.bf16.mxu0 0
        %2206 = vmatmul.mubr.bf16.gmra.mrb[0].mxu0 %v531
        %v2207 = vpop.f32.mrb[0].mxu0
        %v2208 = vadd.f32 0.0, %v2207
        %v2209 = vpop.f32.mrb[0].mxu0
        %v2210 = vpop.f32.mrb[0].mxu0
        %v2211 = vadd.f32 0.0, %v2210
        %v2212 = vpop.f32.mrb[0].mxu0
        %2213 = vmatprep.mubr.bf16.mxu0 0
        %2214 = vmatmul.mubr.bf16.gmra.mrb[0].mxu0 %v534
        %v2215 = vpop.f32.mrb[0].mxu0
        %v2216 = vadd.f32 0.0, %v2215
        %v2217 = vpop.f32.mrb[0].mxu0
        %v2218 = vpop.f32.mrb[0].mxu0
        %v2219 = vadd.f32 0.0, %v2218
        %v2220 = vpop.f32.mrb[0].mxu0
        %2221 = vmatprep.mubr.bf16.mxu0 0
        %2222 = vmatmul.mubr.bf16.gmra.mrb[0].mxu0 %v537
        %v2223 = vpop.f32.mrb[0].mxu0
        %v2224 = vadd.f32 0.0, %v2223
        %v2225 = vpop.f32.mrb[0].mxu0
        %v2226 = vpop.f32.mrb[0].mxu0
        %v2227 = vadd.f32 0.0, %v2226
        %v2228 = vpop.f32.mrb[0].mxu0
        %2229 = vmatprep.mubr.bf16.mxu0 0
        %2230 = vmatmul.mubr.bf16.gmra.mrb[0].mxu0 %v540
        %v2231 = vpop.f32.mrb[0].mxu0
        %v2232 = vadd.f32 0.0, %v2231
        %v2233 = vpop.f32.mrb[0].mxu0
        %v2234 = vpop.f32.mrb[0].mxu0
        %v2235 = vadd.f32 0.0, %v2234
        %v2236 = vpop.f32.mrb[0].mxu0
        %2237 = vmatprep.mubr.bf16.mxu0 0
        %2238 = vmatmul.mubr.bf16.gmra.mrb[0].mxu0 %v543
        %v2239 = vpop.f32.mrb[0].mxu0
        %v2240 = vadd.f32 0.0, %v2239
        %v2241 = vpop.f32.mrb[0].mxu0
        %v2242 = vpop.f32.mrb[0].mxu0
        %v2243 = vadd.f32 0.0, %v2242
        %v2244 = vpop.f32.mrb[0].mxu0
        %2245 = vmatprep.mubr.bf16.mxu0 0
        %2246 = vmatmul.mubr.bf16.gmra.mrb[0].mxu0 %v546
        %v2247 = vpop.f32.mrb[0].mxu0
        %v2248 = vadd.f32 0.0, %v2247
        %v2249 = vpop.f32.mrb[0].mxu0
        %v2250 = vpop.f32.mrb[0].mxu0
        %v2251 = vadd.f32 0.0, %v2250
        %v2252 = vpop.f32.mrb[0].mxu0
        %2253 = vmatprep.mubr.bf16.mxu0 0
        %2254 = vmatmul.mubr.bf16.gmra.mrb[0].mxu0 %v549
        %v2255 = vpop.f32.mrb[0].mxu0
        %v2256 = vadd.f32 0.0, %v2255
        %v2257 = vpop.f32.mrb[0].mxu0
        %v2258 = vpop.f32.mrb[0].mxu0
        %v2259 = vadd.f32 0.0, %v2258
        %v2260 = vpop.f32.mrb[0].mxu0
        %2261 = vmatprep.mubr.bf16.mxu0 0
        %2262 = vmatmul.mubr.bf16.gmra.mrb[0].mxu0 %v552
        %v2263 = vpop.f32.mrb[0].mxu0
        %v2264 = vadd.f32 0.0, %v2263
        %v2265 = vpop.f32.mrb[0].mxu0
        %v2266 = vpop.f32.mrb[0].mxu0
        %v2267 = vadd.f32 0.0, %v2266
        %v2268 = vpop.f32.mrb[0].mxu0
        %2269 = vmatprep.mubr.bf16.mxu0 0
        %2270 = vmatmul.mubr.bf16.gmra.mrb[0].mxu0 %v555
        %v2271 = vpop.f32.mrb[0].mxu0
        %v2272 = vadd.f32 0.0, %v2271
        %v2273 = vpop.f32.mrb[0].mxu0
        %v2274 = vpop.f32.mrb[0].mxu0
        %v2275 = vadd.f32 0.0, %v2274
        %v2276 = vpop.f32.mrb[0].mxu0
        %2277 = vmatprep.mubr.bf16.mxu0 0
        %2278 = vmatmul.mubr.bf16.gmra.mrb[0].mxu0 %v558
        %v2279 = vpop.f32.mrb[0].mxu0
        %v2280 = vadd.f32 0.0, %v2279
        %v2281 = vpop.f32.mrb[0].mxu0
        %v2282 = vpop.f32.mrb[0].mxu0
        %v2283 = vadd.f32 0.0, %v2282
        %v2284 = vpop.f32.mrb[0].mxu0
        %2285 = vmatprep.mubr.bf16.mxu0 0
        %2286 = vmatmul.mubr.bf16.gmra.mrb[0].mxu0 %v561
        %v2287 = vpop.f32.mrb[0].mxu0
        %v2288 = vadd.f32 0.0, %v2287
        %v2289 = vpop.f32.mrb[0].mxu0
        %v2290 = vpop.f32.mrb[0].mxu0
        %v2291 = vadd.f32 0.0, %v2290
        %v2292 = vpop.f32.mrb[0].mxu0
        %2293 = vmatprep.mubr.bf16.mxu0 0
        %2294 = vmatmul.mubr.bf16.gmra.mrb[0].mxu0 %v564
        %v2295 = vpop.f32.mrb[0].mxu0
        %v2296 = vadd.f32 0.0, %v2295
        %v2297 = vpop.f32.mrb[0].mxu0
        %v2298 = vpop.f32.mrb[0].mxu0
        %v2299 = vadd.f32 0.0, %v2298
        %v2300 = vpop.f32.mrb[0].mxu0
        %2301 = vmatprep.mubr.bf16.mxu0 0
        %2302 = vmatmul.mubr.bf16.gmra.mrb[0].mxu0 %v567
        %v2303 = vpop.f32.mrb[0].mxu0
        %v2304 = vadd.f32 0.0, %v2303
        %v2305 = vpop.f32.mrb[0].mxu0
        %v2306 = vpop.f32.mrb[0].mxu0
        %v2307 = vadd.f32 0.0, %v2306
        %v2308 = vpop.f32.mrb[0].mxu0
        %2309 = vmatprep.mubr.bf16.mxu0 0
        %2310 = vmatmul.mubr.bf16.gmra.mrb[0].mxu0 %v1537
        %v2311 = vpop.f32.mrb[0].mxu0
        %v2312 = vadd.f32 0.0, %v2311
        %v2313 = vpop.f32.mrb[0].mxu0
        %v2314 = vpop.f32.mrb[0].mxu0
        %v2315 = vadd.f32 0.0, %v2314
        %v2316 = vpop.f32.mrb[0].mxu0
        %2317 = vmatprep.mubr.bf16.mxu0 0
        %2318 = vmatmul.mubr.bf16.gmra.mrb[0].mxu0 %v2160
        %v2319 = vpop.f32.mrb[0].mxu0
        %v2320 = vadd.f32 0.0, %v2319
        %v2321 = vpop.f32.mrb[0].mxu0
        %v2322 = vpop.f32.mrb[0].mxu0
        %v2323 = vadd.f32 0.0, %v2322
        %v2324 = vpop.f32.mrb[0].mxu0
        %2325 = vdwg.mxu0
        %v2326 = vadd.f32 %v2114, %v2200
        %v2327 = vadd.f32 %v2115, %v2203
        %v2328 = vadd.f32 %v2116, %v2208
        %v2329 = vadd.f32 %v2117, %v2211
        %v2330 = vadd.f32 %v2118, %v2216
        %v2331 = vadd.f32 %v2119, %v2219
        %v2332 = vadd.f32 %v2120, %v2224
        %v2333 = vadd.f32 %v2121, %v2227
        %v2334 = vadd.f32 %v2122, %v2232
        %v2335 = vadd.f32 %v2123, %v2235
        %v2336 = vadd.f32 %v2124, %v2240
        %v2337 = vadd.f32 %v2125, %v2243
        %v2338 = vadd.f32 %v2126, %v2248
        %v2339 = vadd.f32 %v2127, %v2251
        %v2340 = vadd.f32 %v2128, %v2256
        %v2341 = vadd.f32 %v2129, %v2259
        %v2342 = vadd.f32 %v2130, %v2264
        %v2343 = vadd.f32 %v2131, %v2267
        %v2344 = vadd.f32 %v2132, %v2272
        %v2345 = vadd.f32 %v2133, %v2275
        %v2346 = vadd.f32 %v2134, %v2280
        %v2347 = vadd.f32 %v2135, %v2283
        %v2348 = vadd.f32 %v2136, %v2288
        %v2349 = vadd.f32 %v2137, %v2291
        %v2350 = vadd.f32 %v2138, %v2296
        %v2351 = vadd.f32 %v2139, %v2299
        %v2352 = vadd.f32 %v2140, %v2304
        %v2353 = vadd.f32 %v2141, %v2307
        %v2354 = vadd.f32 %v2142, %v2312
        %v2355 = vadd.f32 %v2143, %v2315
        %v2356 = vadd.f32 %v2144, %v2320
        %v2357 = vadd.f32 %v2145, %v2323
        %v2358 = vrot.slane %v321, 2
        %v2359 = vrot.slane %v322, 2
        %v2360 = vsel %vm946, %v2358, %v2359
        %v2361 = vrot.slane %v323, 2
        %v2362 = vsel %vm946, %v2359, %v2361
        %v2365 = vpack.c.bf16 %v2362, %v2360
        %s2366 = scalar_lea.vmem %s1, 16
        %v2367 = vld [vmem:[%s2366] sm:$0x3]
        %v2369 = vsel %vm520, %v2365, 0
        %v2372 = vsel %vm569, %v2367, 0
        %2374 = vmatprep.subr.bf16.mxu0 0
        %2375 = vmatpush1.bf16.msra.mxu0 %v2372
        %2376 = vmatprep.subr.bf16.mxu0 0
        %2377 = vmatpush1.bf16.msra.mxu0 0
        %2378 = vmatprep.subr.bf16.mxu0 0
        %2379 = vmatpush1.bf16.msra.mxu0 0
        %2380 = vmatprep.subr.bf16.mxu0 0
        %2381 = vmatpush1.bf16.msra.mxu0 0
        %2382 = vmatprep.subr.bf16.mxu0 0
        %2383 = vmatpush1.bf16.msra.mxu0 0
        %2384 = vmatprep.subr.bf16.mxu0 0
        %2385 = vmatpush1.bf16.msra.mxu0 0
        %2386 = vmatprep.subr.bf16.mxu0 0
        %2387 = vmatpush1.bf16.msra.mxu0 0
        %2388 = vmatprep.subr.bf16.mxu0 0
        %2389 = vmatpush1.bf16.msra.mxu0 0
        %2390 = vmatprep.subr.bf16.mxu0 0
        %2391 = vmatpush1.bf16.msra.mxu0 0
        %2392 = vmatprep.subr.bf16.mxu0 0
        %2393 = vmatpush1.bf16.msra.mxu0 0
        %2394 = vmatprep.subr.bf16.mxu0 0
        %2395 = vmatpush1.bf16.msra.mxu0 0
        %2396 = vmatprep.subr.bf16.mxu0 0
        %2397 = vmatpush1.bf16.msra.mxu0 0
        %2398 = vmatprep.subr.bf16.mxu0 0
        %2399 = vmatpush1.bf16.msra.mxu0 0
        %2400 = vmatprep.subr.bf16.mxu0 0
        %2401 = vmatpush1.bf16.msra.mxu0 0
        %2402 = vmatprep.subr.bf16.mxu0 0
        %2403 = vmatpush1.bf16.msra.mxu0 0
        %2404 = vmatprep.subr.bf16.mxu0 0
        %2405 = vmatpush1.bf16.msra.mxu0 0
        %2406 = vmatprep.mubr.bf16.mxu0 0
        %2407 = vmatmul.mubr.bf16.gmra.mrb[0].mxu0 %v1084
        %v2408 = vpop.f32.mrb[0].mxu0
        %v2409 = vadd.f32 0.0, %v2408
        %v2410 = vpop.f32.mrb[0].mxu0
        %v2411 = vpop.f32.mrb[0].mxu0
        %v2412 = vadd.f32 0.0, %v2411
        %v2413 = vpop.f32.mrb[0].mxu0
        %2414 = vmatprep.mubr.bf16.mxu0 0
        %2415 = vmatmul.mubr.bf16.gmra.mrb[0].mxu0 %v1087
        %v2416 = vpop.f32.mrb[0].mxu0
        %v2417 = vadd.f32 0.0, %v2416
        %v2418 = vpop.f32.mrb[0].mxu0
        %v2419 = vpop.f32.mrb[0].mxu0
        %v2420 = vadd.f32 0.0, %v2419
        %v2421 = vpop.f32.mrb[0].mxu0
        %2422 = vmatprep.mubr.bf16.mxu0 0
        %2423 = vmatmul.mubr.bf16.gmra.mrb[0].mxu0 %v1090
        %v2424 = vpop.f32.mrb[0].mxu0
        %v2425 = vadd.f32 0.0, %v2424
        %v2426 = vpop.f32.mrb[0].mxu0
        %v2427 = vpop.f32.mrb[0].mxu0
        %v2428 = vadd.f32 0.0, %v2427
        %v2429 = vpop.f32.mrb[0].mxu0
        %2430 = vmatprep.mubr.bf16.mxu0 0
        %2431 = vmatmul.mubr.bf16.gmra.mrb[0].mxu0 %v1093
        %v2432 = vpop.f32.mrb[0].mxu0
        %v2433 = vadd.f32 0.0, %v2432
        %v2434 = vpop.f32.mrb[0].mxu0
        %v2435 = vpop.f32.mrb[0].mxu0
        %v2436 = vadd.f32 0.0, %v2435
        %v2437 = vpop.f32.mrb[0].mxu0
        %2438 = vmatprep.mubr.bf16.mxu0 0
        %2439 = vmatmul.mubr.bf16.gmra.mrb[0].mxu0 %v1096
        %v2440 = vpop.f32.mrb[0].mxu0
        %v2441 = vadd.f32 0.0, %v2440
        %v2442 = vpop.f32.mrb[0].mxu0
        %v2443 = vpop.f32.mrb[0].mxu0
        %v2444 = vadd.f32 0.0, %v2443
        %v2445 = vpop.f32.mrb[0].mxu0
        %2446 = vmatprep.mubr.bf16.mxu0 0
        %2447 = vmatmul.mubr.bf16.gmra.mrb[0].mxu0 %v1099
        %v2448 = vpop.f32.mrb[0].mxu0
        %v2449 = vadd.f32 0.0, %v2448
        %v2450 = vpop.f32.mrb[0].mxu0
        %v2451 = vpop.f32.mrb[0].mxu0
        %v2452 = vadd.f32 0.0, %v2451
        %v2453 = vpop.f32.mrb[0].mxu0
        %2454 = vmatprep.mubr.bf16.mxu0 0
        %2455 = vmatmul.mubr.bf16.gmra.mrb[0].mxu0 %v1102
        %v2456 = vpop.f32.mrb[0].mxu0
        %v2457 = vadd.f32 0.0, %v2456
        %v2458 = vpop.f32.mrb[0].mxu0
        %v2459 = vpop.f32.mrb[0].mxu0
        %v2460 = vadd.f32 0.0, %v2459
        %v2461 = vpop.f32.mrb[0].mxu0
        %2462 = vmatprep.mubr.bf16.mxu0 0
        %2463 = vmatmul.mubr.bf16.gmra.mrb[0].mxu0 %v1105
        %v2464 = vpop.f32.mrb[0].mxu0
        %v2465 = vadd.f32 0.0, %v2464
        %v2466 = vpop.f32.mrb[0].mxu0
        %v2467 = vpop.f32.mrb[0].mxu0
        %v2468 = vadd.f32 0.0, %v2467
        %v2469 = vpop.f32.mrb[0].mxu0
        %2470 = vmatprep.mubr.bf16.mxu0 0
        %2471 = vmatmul.mubr.bf16.gmra.mrb[0].mxu0 %v1108
        %v2472 = vpop.f32.mrb[0].mxu0
        %v2473 = vadd.f32 0.0, %v2472
        %v2474 = vpop.f32.mrb[0].mxu0
        %v2475 = vpop.f32.mrb[0].mxu0
        %v2476 = vadd.f32 0.0, %v2475
        %v2477 = vpop.f32.mrb[0].mxu0
        %2478 = vmatprep.mubr.bf16.mxu0 0
        %2479 = vmatmul.mubr.bf16.gmra.mrb[0].mxu0 %v1111
        %v2480 = vpop.f32.mrb[0].mxu0
        %v2481 = vadd.f32 0.0, %v2480
        %v2482 = vpop.f32.mrb[0].mxu0
        %v2483 = vpop.f32.mrb[0].mxu0
        %v2484 = vadd.f32 0.0, %v2483
        %v2485 = vpop.f32.mrb[0].mxu0
        %2486 = vmatprep.mubr.bf16.mxu0 0
        %2487 = vmatmul.mubr.bf16.gmra.mrb[0].mxu0 %v1114
        %v2488 = vpop.f32.mrb[0].mxu0
        %v2489 = vadd.f32 0.0, %v2488
        %v2490 = vpop.f32.mrb[0].mxu0
        %v2491 = vpop.f32.mrb[0].mxu0
        %v2492 = vadd.f32 0.0, %v2491
        %v2493 = vpop.f32.mrb[0].mxu0
        %2494 = vmatprep.mubr.bf16.mxu0 0
        %2495 = vmatmul.mubr.bf16.gmra.mrb[0].mxu0 %v1117
        %v2496 = vpop.f32.mrb[0].mxu0
        %v2497 = vadd.f32 0.0, %v2496
        %v2498 = vpop.f32.mrb[0].mxu0
        %v2499 = vpop.f32.mrb[0].mxu0
        %v2500 = vadd.f32 0.0, %v2499
        %v2501 = vpop.f32.mrb[0].mxu0
        %2502 = vmatprep.mubr.bf16.mxu0 0
        %2503 = vmatmul.mubr.bf16.gmra.mrb[0].mxu0 %v1120
        %v2504 = vpop.f32.mrb[0].mxu0
        %v2505 = vadd.f32 0.0, %v2504
        %v2506 = vpop.f32.mrb[0].mxu0
        %v2507 = vpop.f32.mrb[0].mxu0
        %v2508 = vadd.f32 0.0, %v2507
        %v2509 = vpop.f32.mrb[0].mxu0
        %2510 = vmatprep.mubr.bf16.mxu0 0
        %2511 = vmatmul.mubr.bf16.gmra.mrb[0].mxu0 %v1123
        %v2512 = vpop.f32.mrb[0].mxu0
        %v2513 = vadd.f32 0.0, %v2512
        %v2514 = vpop.f32.mrb[0].mxu0
        %v2515 = vpop.f32.mrb[0].mxu0
        %v2516 = vadd.f32 0.0, %v2515
        %v2517 = vpop.f32.mrb[0].mxu0
        %2518 = vmatprep.mubr.bf16.mxu0 0
        %2519 = vmatmul.mubr.bf16.gmra.mrb[0].mxu0 %v1746
        %v2520 = vpop.f32.mrb[0].mxu0
        %v2521 = vadd.f32 0.0, %v2520
        %v2522 = vpop.f32.mrb[0].mxu0
        %v2523 = vpop.f32.mrb[0].mxu0
        %v2524 = vadd.f32 0.0, %v2523
        %v2525 = vpop.f32.mrb[0].mxu0
        %2526 = vmatprep.mubr.bf16.mxu0 0
        %2527 = vmatmul.mubr.bf16.gmra.mrb[0].mxu0 %v2369
        %v2528 = vpop.f32.mrb[0].mxu0
        %v2529 = vadd.f32 0.0, %v2528
        %v2530 = vpop.f32.mrb[0].mxu0
        %v2531 = vpop.f32.mrb[0].mxu0
        %v2532 = vadd.f32 0.0, %v2531
        %v2533 = vpop.f32.mrb[0].mxu0
        %2534 = vdwg.mxu0
        %v2535 = vadd.f32 %v2326, %v2409
        %v2536 = vadd.f32 %v2327, %v2412
        %v2537 = vadd.f32 %v2328, %v2417
        %v2538 = vadd.f32 %v2329, %v2420
        %v2539 = vadd.f32 %v2330, %v2425
        %v2540 = vadd.f32 %v2331, %v2428
        %v2541 = vadd.f32 %v2332, %v2433
        %v2542 = vadd.f32 %v2333, %v2436
        %v2543 = vadd.f32 %v2334, %v2441
        %v2544 = vadd.f32 %v2335, %v2444
        %v2545 = vadd.f32 %v2336, %v2449
        %v2546 = vadd.f32 %v2337, %v2452
        %v2547 = vadd.f32 %v2338, %v2457
        %v2548 = vadd.f32 %v2339, %v2460
        %v2549 = vadd.f32 %v2340, %v2465
        %v2550 = vadd.f32 %v2341, %v2468
        %v2551 = vadd.f32 %v2342, %v2473
        %v2552 = vadd.f32 %v2343, %v2476
        %v2553 = vadd.f32 %v2344, %v2481
        %v2554 = vadd.f32 %v2345, %v2484
        %v2555 = vadd.f32 %v2346, %v2489
        %v2556 = vadd.f32 %v2347, %v2492
        %v2557 = vadd.f32 %v2348, %v2497
        %v2558 = vadd.f32 %v2349, %v2500
        %v2559 = vadd.f32 %v2350, %v2505
        %v2560 = vadd.f32 %v2351, %v2508
        %v2561 = vadd.f32 %v2352, %v2513
        %v2562 = vadd.f32 %v2353, %v2516
        %v2563 = vadd.f32 %v2354, %v2521
        %v2564 = vadd.f32 %v2355, %v2524
        %v2565 = vadd.f32 %v2356, %v2529
        %v2566 = vadd.f32 %v2357, %v2532
        %v2567 = vpack.c.bf16 %v2536, %v2535
        %v2568 = vpack.c.bf16 %v2538, %v2537
        %v2569 = vpack.c.bf16 %v2540, %v2539
        %v2570 = vpack.c.bf16 %v2542, %v2541
        %v2571 = vpack.c.bf16 %v2544, %v2543
        %v2572 = vpack.c.bf16 %v2546, %v2545
        %v2573 = vpack.c.bf16 %v2548, %v2547
        %v2574 = vpack.c.bf16 %v2550, %v2549
        %v2575 = vpack.c.bf16 %v2552, %v2551
        %v2576 = vpack.c.bf16 %v2554, %v2553
        %v2577 = vpack.c.bf16 %v2556, %v2555
        %v2578 = vpack.c.bf16 %v2558, %v2557
        %v2579 = vpack.c.bf16 %v2560, %v2559
        %v2580 = vpack.c.bf16 %v2562, %v2561
        %v2581 = vpack.c.bf16 %v2564, %v2563
        %v2582 = vpack.c.bf16 %v2566, %v2565
        %v2599 = vunpack.c.l.b16 %v2567
        %v2600 = vunpack.c.h.b16 %v2567
        %v2601 = vunpack.c.l.b16 %v2568
        %v2602 = vunpack.c.h.b16 %v2568
        %v2603 = vunpack.c.l.b16 %v2569
        %v2604 = vunpack.c.h.b16 %v2569
        %v2605 = vunpack.c.l.b16 %v2570
        %v2606 = vunpack.c.h.b16 %v2570
        %v2607 = vunpack.c.l.b16 %v2571
        %v2608 = vunpack.c.h.b16 %v2571
        %v2609 = vunpack.c.l.b16 %v2572
        %v2610 = vunpack.c.h.b16 %v2572
        %v2611 = vunpack.c.l.b16 %v2573
        %v2612 = vunpack.c.h.b16 %v2573
        %v2613 = vunpack.c.l.b16 %v2574
        %v2614 = vunpack.c.h.b16 %v2574
        %v2615 = vunpack.c.l.b16 %v2575
        %v2616 = vunpack.c.h.b16 %v2575
        %v2617 = vunpack.c.l.b16 %v2576
        %v2618 = vunpack.c.h.b16 %v2576
        %v2619 = vunpack.c.l.b16 %v2577
        %v2620 = vunpack.c.h.b16 %v2577
        %v2621 = vunpack.c.l.b16 %v2578
        %v2622 = vunpack.c.h.b16 %v2578
        %v2623 = vunpack.c.l.b16 %v2579
        %v2624 = vunpack.c.h.b16 %v2579
        %v2625 = vunpack.c.l.b16 %v2580
        %v2626 = vunpack.c.h.b16 %v2580
        %v2627 = vunpack.c.l.b16 %v2581
        %v2628 = vunpack.c.h.b16 %v2581
        %v2629 = vunpack.c.l.b16 %v2582
        %v2630 = vunpack.c.h.b16 %v2582
        %v2631 = vpack.c.b16 %v2599, %v2599
        %v2632 = vpack.c.b16 %v2600, %v2600
        %v2633 = vpack.c.b16 %v2601, %v2601
        %v2634 = vpack.c.b16 %v2602, %v2602
        %v2635 = vpack.c.b16 %v2603, %v2603
        %v2636 = vpack.c.b16 %v2604, %v2604
        %v2637 = vpack.c.b16 %v2605, %v2605
        %v2638 = vpack.c.b16 %v2606, %v2606
        %v2639 = vpack.c.b16 %v2607, %v2607
        %v2640 = vpack.c.b16 %v2608, %v2608
        %v2641 = vpack.c.b16 %v2609, %v2609
        %v2642 = vpack.c.b16 %v2610, %v2610
        %v2643 = vpack.c.b16 %v2611, %v2611
        %v2644 = vpack.c.b16 %v2612, %v2612
        %v2645 = vpack.c.b16 %v2613, %v2613
        %v2646 = vpack.c.b16 %v2614, %v2614
        %v2647 = vpack.c.b16 %v2615, %v2615
        %v2648 = vpack.c.b16 %v2616, %v2616
        %v2649 = vpack.c.b16 %v2617, %v2617
        %v2650 = vpack.c.b16 %v2618, %v2618
        %v2651 = vpack.c.b16 %v2619, %v2619
        %v2652 = vpack.c.b16 %v2620, %v2620
        %v2653 = vpack.c.b16 %v2621, %v2621
        %v2654 = vpack.c.b16 %v2622, %v2622
        %v2655 = vpack.c.b16 %v2623, %v2623
        %v2656 = vpack.c.b16 %v2624, %v2624
        %v2657 = vpack.c.b16 %v2625, %v2625
        %v2658 = vpack.c.b16 %v2626, %v2626
        %v2659 = vpack.c.b16 %v2627, %v2627
        %v2660 = vpack.c.b16 %v2628, %v2628
        %v2661 = vpack.c.b16 %v2629, %v2629
        %v2662 = vpack.c.b16 %v2630, %v2630
        %2695 = vst [vmem:[%s194] sm:$0xf] %v2631
        %2696 = vst [vmem:[%s194 + $0x4] sm:$0xf] %v2632
        %2697 = vst [vmem:[%s194 + $0x8] sm:$0xf] %v2633
        %2698 = vst [vmem:[%s194 + $0xc] sm:$0xf] %v2634
        %2699 = vst [vmem:[%s194 + $0x10] sm:$0xf] %v2635
        %2700 = vst [vmem:[%s194 + $0x14] sm:$0xf] %v2636
        %2701 = vst [vmem:[%s194 + $0x18] sm:$0xf] %v2637
        %2702 = vst [vmem:[%s194 + $0x1c] sm:$0xf] %v2638
        %2703 = vst [vmem:[%s194 + $0x20] sm:$0xf] %v2639
        %2704 = vst [vmem:[%s194 + $0x24] sm:$0xf] %v2640
        %2705 = vst [vmem:[%s194 + $0x28] sm:$0xf] %v2641
        %2706 = vst [vmem:[%s194 + $0x2c] sm:$0xf] %v2642
        %2707 = vst [vmem:[%s194 + $0x30] sm:$0xf] %v2643
        %2708 = vst [vmem:[%s194 + $0x34] sm:$0xf] %v2644
        %2709 = vst [vmem:[%s194 + $0x38] sm:$0xf] %v2645
        %2710 = vst [vmem:[%s194 + $0x3c] sm:$0xf] %v2646
        %2711 = vst [vmem:[%s194 + $0x40] sm:$0xf] %v2647
        %2712 = vst [vmem:[%s194 + $0x44] sm:$0xf] %v2648
        %2713 = vst [vmem:[%s194 + $0x48] sm:$0xf] %v2649
        %2714 = vst [vmem:[%s194 + $0x4c] sm:$0xf] %v2650
        %2715 = vst [vmem:[%s194 + $0x50] sm:$0xf] %v2651
        %2716 = vst [vmem:[%s194 + $0x54] sm:$0xf] %v2652
        %2717 = vst [vmem:[%s194 + $0x58] sm:$0xf] %v2653
        %2718 = vst [vmem:[%s194 + $0x5c] sm:$0xf] %v2654
        %2719 = vst [vmem:[%s194 + $0x60] sm:$0xf] %v2655
        %2720 = vst [vmem:[%s194 + $0x64] sm:$0xf] %v2656
        %2721 = vst [vmem:[%s194 + $0x68] sm:$0xf] %v2657
        %2722 = vst [vmem:[%s194 + $0x6c] sm:$0xf] %v2658
        %2723 = vst [vmem:[%s194 + $0x70] sm:$0xf] %v2659
        %2724 = vst [vmem:[%s194 + $0x74] sm:$0xf] %v2660
        %2725 = vst [vmem:[%s194 + $0x78] sm:$0xf] %v2661
        %2726 = vst [vmem:[%s194 + $0x7c] sm:$0xf] %v2662
        %v2727 = vmul.f32 %v2535, %v2535
        %v2728 = vmul.f32 %v2536, %v2536
        %v2729 = vmul.f32 %v2537, %v2537
        %v2730 = vmul.f32 %v2538, %v2538
        %v2731 = vmul.f32 %v2539, %v2539
        %v2732 = vmul.f32 %v2540, %v2540
        %v2733 = vmul.f32 %v2541, %v2541
        %v2734 = vmul.f32 %v2542, %v2542
        %v2735 = vmul.f32 %v2543, %v2543
        %v2736 = vmul.f32 %v2544, %v2544
        %v2737 = vmul.f32 %v2545, %v2545
        %v2738 = vmul.f32 %v2546, %v2546
        %v2739 = vmul.f32 %v2547, %v2547
        %v2740 = vmul.f32 %v2548, %v2548
        %v2741 = vmul.f32 %v2549, %v2549
        %v2742 = vmul.f32 %v2550, %v2550
        %v2743 = vmul.f32 %v2551, %v2551
        %v2744 = vmul.f32 %v2552, %v2552
        %v2745 = vmul.f32 %v2553, %v2553
        %v2746 = vmul.f32 %v2554, %v2554
        %v2747 = vmul.f32 %v2555, %v2555
        %v2748 = vmul.f32 %v2556, %v2556
        %v2749 = vmul.f32 %v2557, %v2557
        %v2750 = vmul.f32 %v2558, %v2558
        %v2751 = vmul.f32 %v2559, %v2559
        %v2752 = vmul.f32 %v2560, %v2560
        %v2753 = vmul.f32 %v2561, %v2561
        %v2754 = vmul.f32 %v2562, %v2562
        %v2755 = vmul.f32 %v2563, %v2563
        %v2756 = vmul.f32 %v2564, %v2564
        %v2757 = vmul.f32 %v2565, %v2565
        %v2758 = vmul.f32 %v2566, %v2566
        %v2759 = vadd.f32 %v2535, %v2536
        %v2760 = vadd.f32 %v2759, %v2537
        %v2761 = vadd.f32 %v2760, %v2538
        %v2762 = vadd.f32 %v2761, %v2539
        %v2763 = vadd.f32 %v2762, %v2540
        %v2764 = vadd.f32 %v2763, %v2541
        %v2765 = vadd.f32 %v2764, %v2542
        %v2766 = vadd.f32 %v2765, %v2543
        %v2767 = vadd.f32 %v2766, %v2544
        %v2768 = vadd.f32 %v2767, %v2545
        %v2769 = vadd.f32 %v2768, %v2546
        %v2770 = vadd.f32 %v2769, %v2547
        %v2771 = vadd.f32 %v2770, %v2548
        %v2772 = vadd.f32 %v2771, %v2549
        %v2773 = vadd.f32 %v2772, %v2550
        %v2774 = vadd.f32 %v2773, %v2551
        %v2775 = vadd.f32 %v2774, %v2552
        %v2776 = vadd.f32 %v2775, %v2553
        %v2777 = vadd.f32 %v2776, %v2554
        %v2778 = vadd.f32 %v2777, %v2555
        %v2779 = vadd.f32 %v2778, %v2556
        %v2780 = vadd.f32 %v2779, %v2557
        %v2781 = vadd.f32 %v2780, %v2558
        %v2782 = vadd.f32 %v2781, %v2559
        %v2783 = vadd.f32 %v2782, %v2560
        %v2784 = vadd.f32 %v2783, %v2561
        %v2785 = vadd.f32 %v2784, %v2562
        %v2786 = vadd.f32 %v2785, %v2563
        %v2787 = vadd.f32 %v2786, %v2564
        %v2788 = vadd.f32 %v2787, %v2565
        %v2789 = vadd.f32 %v2788, %v2566
        %2790 = vst [vmem:[%s201] sm:$0xff] %v2789
        %v2791 = vadd.f32 %v2727, %v2728
        %v2792 = vadd.f32 %v2791, %v2729
        %v2793 = vadd.f32 %v2792, %v2730
        %v2794 = vadd.f32 %v2793, %v2731
        %v2795 = vadd.f32 %v2794, %v2732
        %v2796 = vadd.f32 %v2795, %v2733
        %v2797 = vadd.f32 %v2796, %v2734
        %v2798 = vadd.f32 %v2797, %v2735
        %v2799 = vadd.f32 %v2798, %v2736
        %v2800 = vadd.f32 %v2799, %v2737
        %v2801 = vadd.f32 %v2800, %v2738
        %v2802 = vadd.f32 %v2801, %v2739
        %v2803 = vadd.f32 %v2802, %v2740
        %v2804 = vadd.f32 %v2803, %v2741
        %v2805 = vadd.f32 %v2804, %v2742
        %v2806 = vadd.f32 %v2805, %v2743
        %v2807 = vadd.f32 %v2806, %v2744
        %v2808 = vadd.f32 %v2807, %v2745
        %v2809 = vadd.f32 %v2808, %v2746
        %v2810 = vadd.f32 %v2809, %v2747
        %v2811 = vadd.f32 %v2810, %v2748
        %v2812 = vadd.f32 %v2811, %v2749
        %v2813 = vadd.f32 %v2812, %v2750
        %v2814 = vadd.f32 %v2813, %v2751
        %v2815 = vadd.f32 %v2814, %v2752
        %v2816 = vadd.f32 %v2815, %v2753
        %v2817 = vadd.f32 %v2816, %v2754
        %v2818 = vadd.f32 %v2817, %v2755
        %v2819 = vadd.f32 %v2818, %v2756
        %v2820 = vadd.f32 %v2819, %v2757
        %v2821 = vadd.f32 %v2820, %v2758
        %2822 = vst [vmem:[%s208] sm:$0xff] %v2821
        %s2823 = sand.u32 %s77, 1
        %s2824 = scalar_lea.sflag [#allocation3], %s2823
        %s2825 = sand.u32 %s77, 1
        %s2826 = smul.addr %s2825, 128
        %s2827 = scalar_lea.vmem [#allocation2], %s2826
        %s2828 = sand.u32 %s22, 1
        %s2829 = scalar_lea.sflag [#allocation5], %s2828
        %s2830 = sand.u32 %s103, 1
        %s2831 = smul.addr %s2830, 8
        %s2832 = scalar_lea.vmem [#allocation4], %s2831
        %s2833 = sand.u32 %s22, 1
        %s2834 = scalar_lea.sflag [#allocation5], %s2833
        %s2835 = sand.u32 %s129, 1
        %s2836 = smul.addr %s2835, 8
        %s2837 = scalar_lea.vmem [#allocation6], %s2836
        // Predicated region
        $region29: #{tpu_custom_call.1} parent=27 // pred_check
          %p2838 = pneg %p87
        $region30: #{tpu_custom_call.1} parent=27 // pred_check_branch
          %2840 = sbr.rel (%p2838) target = $region32
        $region31: #{tpu_custom_call.1} parent=27 // pred_region
          %s2841 = smul.u32 32, %s22
          %s2843 = ssub.s32 2048, 2048
          %2844 = vsyncadd %s2824, %s2843
          %s2845 = smul.addr %s2841, 64
          %s2846 = scalar_lea.hbm %s2, %s2845
          %s2847 = sshll.u32 %s2827, 4
          %s2848 = int_to_ptr.vmem [resolvable:$true] %s2847
          %2853 = dma.vmem_to_hbm [thread:$0]  %s2848, 2048, %s2846, %s2824, 64, 64, 4
        $region32: #{tpu_custom_call.1} parent=27 // pred_fallthru
          _
        // Predicated region
        $region33: #{tpu_custom_call.1} parent=27 // pred_check
          %p2854 = pneg %p113
        $region34: #{tpu_custom_call.1} parent=27 // pred_check_branch
          %2856 = sbr.rel (%p2854) target = $region36
        $region35: #{tpu_custom_call.1} parent=27 // pred_region
          %s2858 = ssub.s32 128, 128
          %2859 = vsyncadd %s2829, %s2858
          %s2860 = smul.addr %s22, 128
          %s2861 = scalar_lea.hbm %s3, %s2860
          %s2863 = sshll.u32 %s2832, 4
          %s2864 = int_to_ptr.vmem [resolvable:$true] %s2863
          %2866 = dma.vmem_to_hbm [thread:$0]  %s2864, 128, %s2861, %s2829
        $region36: #{tpu_custom_call.1} parent=27 // pred_fallthru
          _
        // Predicated region
        $region37: #{tpu_custom_call.1} parent=27 // pred_check
          %p2867 = pneg %p139
        $region38: #{tpu_custom_call.1} parent=27 // pred_check_branch
          %2869 = sbr.rel (%p2867) target = $region40
        $region39: #{tpu_custom_call.1} parent=27 // pred_region
          %s2871 = ssub.s32 128, 128
          %2872 = vsyncadd %s2834, %s2871
          %s2873 = smul.addr %s22, 128
          %s2874 = scalar_lea.hbm %s4, %s2873
          %s2876 = sshll.u32 %s2837, 4
          %s2877 = int_to_ptr.vmem [resolvable:$true] %s2876
          %2879 = dma.vmem_to_hbm [thread:$0]  %s2877, 128, %s2874, %s2834
        $region40: #{tpu_custom_call.1} parent=27 // pred_fallthru
          _
      $region28: #{tpu_custom_call.1} parent=5 // pred_fallthru
        _
      %p2880 = scmp.le.s32.totalorder 2, %s17
      // Predicated region
      $region41: #{tpu_custom_call.1} parent=5 // pred_check
        %p2881 = pneg %p2880
      $region42: #{tpu_custom_call.1} parent=5 // pred_check_branch
        %2883 = sbr.rel (%p2881) target = $region44
      $region43: #{tpu_custom_call.1} parent=5 // pred_region
        %s2884 = ssub.s32 %s17, 2
        // Predicated region
        $region45: #{tpu_custom_call.1} parent=43 // pred_check
          %p2885 = pneg %p93
        $region46: #{tpu_custom_call.1} parent=43 // pred_check_branch
          %2887 = sbr.rel (%p2885) target = $region48
        $region47: #{tpu_custom_call.1} parent=43 // pred_region
          %s2888 = sand.u32 %s78, 1
          %s2889 = scalar_lea.sflag [#allocation3], %s2888
          %s2890 = sand.u32 %s78, 1
          %s2891 = smul.addr %s2890, 128
          %s2892 = scalar_lea.vmem [#allocation2], %s2891
          %2893 = dma.done %s2889, 2048
        $region48: #{tpu_custom_call.1} parent=43 // pred_fallthru
          _
        // Predicated region
        $region49: #{tpu_custom_call.1} parent=43 // pred_check
          %p2894 = pneg %p119
        $region50: #{tpu_custom_call.1} parent=43 // pred_check_branch
          %2896 = sbr.rel (%p2894) target = $region52
        $region51: #{tpu_custom_call.1} parent=43 // pred_region
          %s2897 = sand.u32 %s23, 1
          %s2898 = scalar_lea.sflag [#allocation5], %s2897
          %s2899 = sand.u32 %s104, 1
          %s2900 = smul.addr %s2899, 8
          %s2901 = scalar_lea.vmem [#allocation4], %s2900
          %2902 = dma.done %s2898, 128
        $region52: #{tpu_custom_call.1} parent=43 // pred_fallthru
          _
        // Predicated region
        $region53: #{tpu_custom_call.1} parent=43 // pred_check
          %p2903 = pneg %p145
        $region54: #{tpu_custom_call.1} parent=43 // pred_check_branch
          %2905 = sbr.rel (%p2903) target = $region56
        $region55: #{tpu_custom_call.1} parent=43 // pred_region
          %s2906 = sand.u32 %s23, 1
          %s2907 = scalar_lea.sflag [#allocation5], %s2906
          %s2908 = sand.u32 %s130, 1
          %s2909 = smul.addr %s2908, 8
          %s2910 = scalar_lea.vmem [#allocation6], %s2909
          %2911 = dma.done %s2907, 128
        $region56: #{tpu_custom_call.1} parent=43 // pred_fallthru
          _
      $region44: #{tpu_custom_call.1} parent=5 // pred_fallthru
        _
    $region6: #{tpu_custom_call.1} parent=1 // loop_footer
      %s21 = sadd.s32 1, %s17
    $region7: #{tpu_custom_call.1} parent=1 // loop_footer_branch
      %16 = sbr.rel target = $region3
    $region8: #{tpu_custom_call.1} parent=1 // loop_exit
      _
    %2912 = vsyncpa [#allocation3], 1
    %s2913 = scalar_lea.sflag [#allocation3], 1
    %2914 = vsyncpa %s2913, 1
    %2915 = vsyncpa [#allocation5], 1
    %s2916 = scalar_lea.sflag [#allocation5], 1
    %2917 = vsyncpa %s2916, 1

</llo_original>
